<compile_context>
chip_gen: v5e
topology: v5e:2x2
jax: 0.10.0
libtpu: 0.0.40
codegen_flags: <defaults>
</compile_context>

<pallas_src>
import math
import numpy as np
import jax
import jax.numpy as jnp
from jax.experimental import pallas as pl
from jax.experimental.pallas import tpu as pltpu

# ---------------- model hyper-parameters --------------------------------------
D_MODEL = 32
N_HEAD = 4
D_K = D_MODEL          # MultiHeadAttention default: d_k = d_model
D_V = D_MODEL          # MultiHeadAttention default: d_v = d_model
D_FF = 64              # dim_feedforward
EPS_LN = 1e-5          # nn.LayerNorm default eps for norm1/2/3

HW = N_HEAD * D_MODEL                              # 128: width of a fused attn block
FF_W = ((max(D_FF, D_MODEL) + 127) // 128) * 128   # 128: lane-dense FFN group width
CW = FF_W                                          # lane width of small-vector slab
assert HW % 128 == 0 and D_FF <= FF_W

# lane offsets inside the single weight slab (all regions have D_MODEL rows)
A_QK1 = 0                 # fused Wq1_h @ Wk1_h^T / sqrt(dk)  (per head), width HW
A_VO1 = A_QK1 + HW        # fused Wv1_h @ Wo1_h               (per head), width HW
A_QK2 = A_VO1 + HW
A_VO2 = A_QK2 + HW
A_F1 = A_VO2 + HW         # wf1   zero-padded to FF_W lanes
A_F2T = A_F1 + FF_W       # wf2^T zero-padded to FF_W lanes
A_W = A_F2T + FF_W        # 768


# ---------------- timing signal (plain JAX glue; deterministic fn of shapes) --
def _timing_signal(length, d_model, min_timescale=1.0, max_timescale=10000.0):
    num_timescales = d_model // 2
    log_inc = math.log(max_timescale / min_timescale) / (num_timescales - 1)
    inv = min_timescale * np.exp(
        np.arange(num_timescales, dtype=np.float32) * -np.float32(log_inc))
    pos = np.arange(length, dtype=np.float32)
    scaled = pos[:, None] * inv[None, :]
    sig = np.concatenate([np.sin(scaled), np.cos(scaled)], axis=1)
    return jnp.asarray(sig, dtype=jnp.float32)        # (length, d_model)


# ---------------- in-kernel helpers ------------------------------------------
def _layernorm(x, g, b):
    mu = jnp.mean(x, axis=-1, keepdims=True)
    var = jnp.mean(jnp.square(x - mu), axis=-1, keepdims=True)
    return (x - mu) * jax.lax.rsqrt(var + EPS_LN) * g + b


def _mha_core(a, kv, z):
    """Per-batch multi-head attention core on fused projections.

    a : (Lq, N_HEAD*D) = X_q @ [Wq_h Wk_h^T / sqrt(dk)]_h  (head h at lanes h*D)
    kv: (Lk, D)        = key/value input (timing signal already added)
    z : (Lk, N_HEAD*D) = X_v @ [Wv_h Wo_h]_h               (head h at lanes h*D)

    Returns sum_h softmax(a_h @ kv^T) @ z_h, i.e. the MHA output AFTER the
    output projection (value/output projections are fused into z), shape
    (Lq, D), WITHOUT the residual.
    """
    out = jnp.zeros((a.shape[0], D_MODEL), jnp.float32)
    for h in range(N_HEAD):                        # static unroll, tiny blocks
        lo = h * D_MODEL
        s = jax.lax.dot_general(a[:, lo:lo + D_MODEL], kv,
                                (((1,), (1,)), ((), ())),
                                preferred_element_type=jnp.float32)  # (Lq, Lk)
        s = s - jnp.max(s, axis=-1, keepdims=True)
        p = jnp.exp(s)
        # exact reciprocal: approx=True (EUP) is ~1e-3 relative -- too coarse
        # to guarantee the 1e-4 reference check.
        p = p * pl.reciprocal(jnp.sum(p, axis=-1, keepdims=True))
        out = out + jnp.dot(p, z[:, lo:lo + D_MODEL],
                            preferred_element_type=jnp.float32)      # (Lq, D)
    return out


# ---------------- the Pallas kernel -------------------------------------------
def _make_kernel(bb, l_t, l_m):
    """bb = batch elements per grid step; l_t / l_m = tgt / memory lengths."""
    n_t, n_m = bb * l_t, bb * l_m

    def kernel(tgt_ref, mem_ref, sig_ref, wa_ref, wc_ref, out_ref):
        # --- grid-invariant small vectors: ONE load, sliced in registers -----
        wc = wc_ref[...]                              # (8, CW)
        bf1 = wc[0:1, :]                              # zero beyond D_FF
        bf2 = wc[1:2, :D_MODEL]
        g1, b1 = wc[2:3, :D_MODEL], wc[3:4, :D_MODEL]
        g2, b2 = wc[4:5, :D_MODEL], wc[5:6, :D_MODEL]
        g3, b3 = wc[6:7, :D_MODEL], wc[7:8, :D_MODEL]

        sig_t = sig_ref[0:n_t, :]                     # pre-tiled per block
        sig_m = sig_ref[n_t:n_t + n_m, :]

        # ================= self-attention =====================================
        # q = k = v = tgt + signal (add_timing_signal mutates tgt in-place).
        x = tgt_ref[...] + sig_t                                     # (n_t, D)
        # fused QK / VO projections for ALL batch rows in one matmul
        az1 = jnp.dot(x, wa_ref[:, A_QK1:A_VO1 + HW],
                      preferred_element_type=jnp.float32)            # (n_t, 2*HW)
        a1, z1 = az1[:, :HW], az1[:, HW:]

        rows = []
        for bi in range(bb):                 # only score/softmax/PV per batch
            r = bi * l_t
            rows.append(_mha_core(a1[r:r + l_t], x[r:r + l_t], z1[r:r + l_t]))
        attn1 = rows[0] if bb == 1 else jnp.concatenate(rows, axis=0)
        # inner MHA residual (+x) plus the decoder residual (+x), then norm1
        t = _layernorm(x + (attn1 + x), g1, b1)

        # ================= cross-attention ====================================
        xq = t + sig_t                       # signal re-added (in-place) to tgt
        m = mem_ref[...] + sig_m             # and to memory              (n_m, D)
        a2 = jnp.dot(xq, wa_ref[:, A_QK2:A_QK2 + HW],
                     preferred_element_type=jnp.float32)             # (n_t, HW)
        z2 = jnp.dot(m, wa_ref[:, A_VO2:A_VO2 + HW],
                     preferred_element_type=jnp.float32)             # (n_m, HW)

        rows = []
        for bi in range(bb):
            rq, rk = bi * l_t, bi * l_m
            rows.append(_mha_core(a2[rq:rq + l_t], m[rk:rk + l_m],
                                  z2[rk:rk + l_m]))
        attn2 = rows[0] if bb == 1 else jnp.concatenate(rows, axis=0)
        t = _layernorm(xq + (attn2 + xq), g2, b2)

        # ================= feed-forward (relu); dropouts are identity =========
        h = jnp.maximum(jnp.dot(t, wa_ref[:, A_F1:A_F1 + FF_W],
                                preferred_element_type=jnp.float32) + bf1, 0.0)
        f = jax.lax.dot_general(h, wa_ref[:, A_F2T:A_F2T + FF_W],
                                (((1,), (1,)), ((), ())),
                                preferred_element_type=jnp.float32) + bf2
        out_ref[...] = _layernorm(t + f, g3, b3)

    return kernel


# ---------------- host-side parameter packing ---------------------------------
def pack_params(p):
    """Fuse per-head (Wq_h Wk_h^T / sqrt(dk)) and (Wv_h Wo_h) host-side and pack
    everything into one lane-dense (D_MODEL, A_W) slab + one (8, CW) slab."""
    hp = jax.lax.Precision.HIGHEST          # keep the weight fusion f32-accurate
    scale = 1.0 / math.sqrt(D_K)

    def fuse_qk(wq, wk):
        blocks = [jnp.matmul(wq[:, h * D_K:(h + 1) * D_K],
                             wk[:, h * D_K:(h + 1) * D_K].T,
                             precision=hp) * scale
                  for h in range(N_HEAD)]
        return jnp.concatenate(blocks, axis=1)              # (D, N_HEAD*D)

    def fuse_vo(wv, wo):
        blocks = [jnp.matmul(wv[:, h * D_V:(h + 1) * D_V],
                             wo[h * D_V:(h + 1) * D_V, :], precision=hp)
                  for h in range(N_HEAD)]
        return jnp.concatenate(blocks, axis=1)              # (D, N_HEAD*D)

    def pad_lanes(w, width):
        return jnp.pad(w, ((0, 0), (0, width - w.shape[1])))

    wa = jnp.concatenate([
        fuse_qk(p["wq1"], p["wk1"]),
        fuse_vo(p["wv1"], p["wo1"]),
        fuse_qk(p["wq2"], p["wk2"]),
        fuse_vo(p["wv2"], p["wo2"]),
        pad_lanes(p["wf1"], FF_W),
        pad_lanes(p["wf2"].T, FF_W),      # transposed -> lane-dense contraction
    ], axis=1)                                              # (D_MODEL, A_W)
    assert wa.shape == (D_MODEL, A_W)

    def row(v):
        v = v.reshape(-1)
        return jnp.pad(v, (0, CW - v.shape[0]))[None, :]

    wc = jnp.concatenate([row(p["bf1"]), row(p["bf2"]),
                          row(p["g1"]), row(p["b1"]),
                          row(p["g2"]), row(p["b2"]),
                          row(p["g3"]), row(p["b3"])], axis=0)   # (8, CW)
    return wa, wc


# ---------------- wrapper ------------------------------------------------------
def _default_batch_block(B, l_t, l_m):
    # Tiny problems -> one grid step: per-step overhead (~0.35 us) and the
    # re-fetch of the invariant weight slab per step dominate, and splitting a
    # couple of batch elements across two TensorCores buys nothing.  Larger
    # batches -> cap the block at 8 so the unrolled attention core stays small
    # while a "parallel" batch axis can still feed both TensorCores and keep
    # the activation DMA pipelined.
    if B * l_t <= 256:
        return B
    for bb in range(min(B, 8), 0, -1):
        if B % bb:
            continue
        if bb == B or ((bb * l_t) % 8 == 0 and (bb * l_m) % 8 == 0):
            return bb
    return B


def transformer_decoder_layer(tgt, memory, params, batch_block=None):
    B, L, D = tgt.shape
    Lm = memory.shape[1]
    assert D == D_MODEL

    if batch_block is None:
        batch_block = _default_batch_block(B, L, Lm)
    batch_block = max(1, min(int(batch_block), B))
    if B % batch_block or (batch_block != B and
                           ((batch_block * L) % 8 or (batch_block * Lm) % 8)):
        batch_block = B                         # fall back to a single grid step
    grid_b = B // batch_block
    nt, nm = batch_block * L, batch_block * Lm

    # timing signals, pre-tiled for one batch block (grid-invariant input)
    sig = jnp.concatenate(
        [jnp.tile(_timing_signal(L, D), (batch_block, 1)),
         jnp.tile(_timing_signal(Lm, D), (batch_block, 1))], axis=0)

    wa, wc = pack_params(params)
    kernel = _make_kernel(batch_block, L, Lm)

    # batch folded into the row (sublane) dimension so every row-wise matmul /
    # layernorm runs once over the whole block
    tgt_flat = tgt.reshape(B * L, D)
    mem_flat = memory.reshape(B * Lm, D)

    in_specs = [
        pl.BlockSpec((nt, D), lambda i: (i, 0)),
        pl.BlockSpec((nm, D), lambda i: (i, 0)),
        pl.BlockSpec(sig.shape, lambda i: (0, 0)),
        pl.BlockSpec(wa.shape, lambda i: (0, 0)),
        pl.BlockSpec(wc.shape, lambda i: (0, 0)),
    ]
    out_spec = pl.BlockSpec((nt, D), lambda i: (i, 0))

    # NOTE: VMEM footprint here is ~0.3 MB.  For production sequence lengths,
    # add a grid axis over L, stream the memory side flash-style and set
    # pltpu.CompilerParams(vmem_limit_bytes=...) (v7x: 64 MiB physical).
    out_flat = pl.pallas_call(
        kernel,
        out_shape=jax.ShapeDtypeStruct((B * L, D), jnp.float32),
        grid=(grid_b,),
        in_specs=in_specs,
        out_specs=out_spec,
        compiler_params=pltpu.CompilerParams(dimension_semantics=("parallel",)),
    )(tgt_flat, mem_flat, sig, wa, wc)
    return out_flat.reshape(B, L, D)


# ---------------- deterministic parameter init --------------------------------
def init_params(key):
    ks = jax.random.split(key, 16)

    def lin(k, fin, fout):
        bound = 1.0 / math.sqrt(fin)
        return jax.random.uniform(k, (fin, fout), jnp.float32, -bound, bound)

    p = {
        "wq1": lin(ks[0], D_MODEL, N_HEAD * D_K),
        "wk1": lin(ks[1], D_MODEL, N_HEAD * D_K),
        "wv1": lin(ks[2], D_MODEL, N_HEAD * D_V),
        "wo1": lin(ks[3], N_HEAD * D_V, D_MODEL),
        "wq2": lin(ks[4], D_MODEL, N_HEAD * D_K),
        "wk2": lin(ks[5], D_MODEL, N_HEAD * D_K),
        "wv2": lin(ks[6], D_MODEL, N_HEAD * D_V),
        "wo2": lin(ks[7], N_HEAD * D_V, D_MODEL),
        "wf1": lin(ks[8], D_MODEL, D_FF),
        "bf1": jax.random.uniform(ks[9], (1, D_FF), jnp.float32,
                                  -1.0 / math.sqrt(D_MODEL), 1.0 / math.sqrt(D_MODEL)),
        "wf2": lin(ks[10], D_FF, D_MODEL),
        "bf2": jax.random.uniform(ks[11], (1, D_MODEL), jnp.float32,
                                  -1.0 / math.sqrt(D_FF), 1.0 / math.sqrt(D_FF)),
        # LayerNorm params (torch default init: ones / zeros)
        "g1": jnp.ones((1, D_MODEL), jnp.float32),
        "b1": jnp.zeros((1, D_MODEL), jnp.float32),
        "g2": jnp.ones((1, D_MODEL), jnp.float32),
        "b2": jnp.zeros((1, D_MODEL), jnp.float32),
        "g3": jnp.ones((1, D_MODEL), jnp.float32),
        "b3": jnp.zeros((1, D_MODEL), jnp.float32),
    }
    return p


# ---------------- pure-JAX reference (for a sanity check) ---------------------
def reference(tgt, memory, p):
    B, L, D = tgt.shape
    Lm = memory.shape[1]
    sig_t = _timing_signal(L, D)
    sig_m = _timing_signal(Lm, D)

    def mha(xq, xk, xv, wq, wk, wv, wo):
        q = (xq @ wq).reshape(B, -1, N_HEAD, D_K).transpose(0, 2, 1, 3)
        k = (xk @ wk).reshape(B, -1, N_HEAD, D_K).transpose(0, 2, 1, 3)
        v = (xv @ wv).reshape(B, -1, N_HEAD, D_V).transpose(0, 2, 1, 3)
        s = jnp.einsum("bhqd,bhkd->bhqk", q / math.sqrt(D_K), k)
        a = jax.nn.softmax(s, axis=-1)
        o = jnp.einsum("bhqk,bhkd->bhqd", a, v)
        o = o.transpose(0, 2, 1, 3).reshape(B, -1, N_HEAD * D_V)
        return o @ wo + xq

    def ln(x, g, b):
        mu = jnp.mean(x, -1, keepdims=True)
        var = jnp.mean((x - mu) ** 2, -1, keepdims=True)
        return (x - mu) / jnp.sqrt(var + EPS_LN) * g + b

    x = tgt + sig_t[None]
    t = ln(x + mha(x, x, x, p["wq1"], p["wk1"], p["wv1"], p["wo1"]), p["g1"], p["b1"])
    xq = t + sig_t[None]
    m = memory + sig_m[None]
    t = ln(xq + mha(xq, m, m, p["wq2"], p["wk2"], p["wv2"], p["wo2"]), p["g2"], p["b2"])
    h = jnp.maximum(t @ p["wf1"] + p["bf1"], 0.0)
    f = h @ p["wf2"] + p["bf2"]
    return ln(t + f, p["g3"], p["b3"])


# ---------------- main ---------------------------------------------------------
if __name__ == "__main__":
    key = jax.random.PRNGKey(0)
    k_tgt, k_mem, k_par = jax.random.split(key, 3)

    B, L_TGT, L_MEM = 2, 8, 12
    tgt = jax.random.normal(k_tgt, (B, L_TGT, D_MODEL), jnp.float32)
    memory = jax.random.normal(k_mem, (B, L_MEM, D_MODEL), jnp.float32)
    params = init_params(k_par)

    out = transformer_decoder_layer(tgt, memory, params)
    out = jax.block_until_ready(out)

    ref = jax.block_until_ready(reference(tgt, memory, params))
    np.testing.assert_allclose(np.asarray(out), np.asarray(ref),
                               rtol=1e-4, atol=1e-4)

    print("KERNEL_OK")
</pallas_src>

<mosaic_0001>
module attributes {stable_mosaic.version = 11 : i64} {
  func.func @kernel(%arg0: i32, %arg1: memref<16x32xf32, #tpu.memory_space<vmem>>, %arg2: memref<24x32xf32, #tpu.memory_space<vmem>>, %arg3: memref<40x32xf32, #tpu.memory_space<vmem>>, %arg4: memref<32x768xf32, #tpu.memory_space<vmem>>, %arg5: memref<8x128xf32, #tpu.memory_space<vmem>>, %arg6: memref<16x32xf32, #tpu.memory_space<vmem>>) attributes {dimension_semantics = [#tpu.dimension_semantics<parallel>], iteration_bounds = array<i64: 1>, scalar_prefetch = 0 : i64, scratch_operands = 0 : i64, tpu.core_type = #tpu.core_type<tc>, window_params = [{transform_indices = @transform_0, window_bounds = array<i64: 16, 32>}, {transform_indices = @transform_1, window_bounds = array<i64: 24, 32>}, {pipeline_mode = #tpu.pipeline_mode<synchronous>, transform_indices = @transform_2, window_bounds = array<i64: 40, 32>}, {pipeline_mode = #tpu.pipeline_mode<synchronous>, transform_indices = @transform_3, window_bounds = array<i64: 32, 768>}, {pipeline_mode = #tpu.pipeline_mode<synchronous>, transform_indices = @transform_4, window_bounds = array<i64: 8, 128>}, {transform_indices = @transform_5, window_bounds = array<i64: 16, 32>}]} {
    %c0 = arith.constant 0 : index
    %c0_0 = arith.constant 0 : index
    %0 = vector.load %arg5[%c0, %c0_0] : memref<8x128xf32, #tpu.memory_space<vmem>>, vector<8x128xf32>
    %1 = vector.extract_strided_slice %0 {offsets = [0, 0], sizes = [1, 128], strides = [1, 1]} : vector<8x128xf32> to vector<1x128xf32>
    %2 = vector.extract_strided_slice %0 {offsets = [1, 0], sizes = [1, 32], strides = [1, 1]} : vector<8x128xf32> to vector<1x32xf32>
    %3 = vector.extract_strided_slice %0 {offsets = [2, 0], sizes = [1, 32], strides = [1, 1]} : vector<8x128xf32> to vector<1x32xf32>
    %4 = vector.extract_strided_slice %0 {offsets = [3, 0], sizes = [1, 32], strides = [1, 1]} : vector<8x128xf32> to vector<1x32xf32>
    %5 = vector.extract_strided_slice %0 {offsets = [4, 0], sizes = [1, 32], strides = [1, 1]} : vector<8x128xf32> to vector<1x32xf32>
    %6 = vector.extract_strided_slice %0 {offsets = [5, 0], sizes = [1, 32], strides = [1, 1]} : vector<8x128xf32> to vector<1x32xf32>
    %7 = vector.extract_strided_slice %0 {offsets = [6, 0], sizes = [1, 32], strides = [1, 1]} : vector<8x128xf32> to vector<1x32xf32>
    %8 = vector.extract_strided_slice %0 {offsets = [7, 0], sizes = [1, 32], strides = [1, 1]} : vector<8x128xf32> to vector<1x32xf32>
    %c0_1 = arith.constant 0 : index
    %c0_2 = arith.constant 0 : index
    %9 = vector.load %arg3[%c0_1, %c0_2] : memref<40x32xf32, #tpu.memory_space<vmem>>, vector<16x32xf32>
    %c16 = arith.constant 16 : index
    %c0_3 = arith.constant 0 : index
    %10 = vector.load %arg3[%c16, %c0_3] : memref<40x32xf32, #tpu.memory_space<vmem>>, vector<24x32xf32>
    %c0_4 = arith.constant 0 : index
    %c0_5 = arith.constant 0 : index
    %11 = vector.load %arg1[%c0_4, %c0_5] : memref<16x32xf32, #tpu.memory_space<vmem>>, vector<16x32xf32>
    %12 = arith.addf %11, %9 : vector<16x32xf32>
    %c0_6 = arith.constant 0 : index
    %c0_7 = arith.constant 0 : index
    %13 = vector.load %arg4[%c0_6, %c0_7] : memref<32x768xf32, #tpu.memory_space<vmem>>, vector<32x256xf32>
    %cst = arith.constant dense<0.000000e+00> : vector<16x256xf32>
    %14 = tpu.matmul %12, %13, %cst {dimension_numbers = #tpu.dot_dimension_numbers<[1], [0], [0], [1], [0, 0, 1, 1], [], []>} : vector<16x32xf32>, vector<32x256xf32>, vector<16x256xf32> -> vector<16x256xf32>
    %15 = vector.extract_strided_slice %14 {offsets = [0, 0], sizes = [16, 128], strides = [1, 1]} : vector<16x256xf32> to vector<16x128xf32>
    %16 = vector.extract_strided_slice %14 {offsets = [0, 128], sizes = [16, 128], strides = [1, 1]} : vector<16x256xf32> to vector<16x128xf32>
    %17 = vector.extract_strided_slice %15 {offsets = [0, 0], sizes = [8, 128], strides = [1, 1]} : vector<16x128xf32> to vector<8x128xf32>
    %18 = vector.extract_strided_slice %12 {offsets = [0, 0], sizes = [8, 32], strides = [1, 1]} : vector<16x32xf32> to vector<8x32xf32>
    %19 = vector.extract_strided_slice %16 {offsets = [0, 0], sizes = [8, 128], strides = [1, 1]} : vector<16x128xf32> to vector<8x128xf32>
    %cst_8 = arith.constant 0.000000e+00 : f32
    %20 = vector.broadcast %cst_8 : f32 to vector<8x32xf32>
    %21 = vector.extract_strided_slice %17 {offsets = [0, 0], sizes = [8, 32], strides = [1, 1]} : vector<8x128xf32> to vector<8x32xf32>
    %cst_9 = arith.constant dense<0.000000e+00> : vector<8x8xf32>
    %22 = tpu.matmul %21, %18, %cst_9 {dimension_numbers = #tpu.dot_dimension_numbers<[1], [1], [0], [0], [0, 0, 1, 0], [], []>} : vector<8x32xf32>, vector<8x32xf32>, vector<8x8xf32> -> vector<8x8xf32>
    %cst_10 = arith.constant dense<0xFF800000> : vector<8xf32>
    %23 = vector.multi_reduction <maximumf>, %22, %cst_10 [1] : vector<8x8xf32> to vector<8xf32>
    %24 = vector.shape_cast %23 : vector<8xf32> to vector<8x1xf32>
    %25 = vector.broadcast %24 : vector<8x1xf32> to vector<8x8xf32>
    %26 = arith.subf %22, %25 : vector<8x8xf32>
    %27 = math.exp %26 : vector<8x8xf32>
    %cst_11 = arith.constant dense<0.000000e+00> : vector<8xf32>
    %28 = vector.multi_reduction <add>, %27, %cst_11 [1] : vector<8x8xf32> to vector<8xf32>
    %29 = vector.shape_cast %28 : vector<8xf32> to vector<8x1xf32>
    %30 = tpu.reciprocal %29 : vector<8x1xf32> -> vector<8x1xf32>
    %31 = vector.broadcast %30 : vector<8x1xf32> to vector<8x8xf32>
    %32 = arith.mulf %27, %31 : vector<8x8xf32>
    %33 = vector.extract_strided_slice %19 {offsets = [0, 0], sizes = [8, 32], strides = [1, 1]} : vector<8x128xf32> to vector<8x32xf32>
    %cst_12 = arith.constant dense<0.000000e+00> : vector<8x32xf32>
    %34 = tpu.matmul %32, %33, %cst_12 {dimension_numbers = #tpu.dot_dimension_numbers<[1], [0], [0], [1], [0, 0, 1, 1], [], []>} : vector<8x8xf32>, vector<8x32xf32>, vector<8x32xf32> -> vector<8x32xf32>
    %35 = arith.addf %20, %34 : vector<8x32xf32>
    %36 = vector.extract_strided_slice %17 {offsets = [0, 32], sizes = [8, 32], strides = [1, 1]} : vector<8x128xf32> to vector<8x32xf32>
    %cst_13 = arith.constant dense<0.000000e+00> : vector<8x8xf32>
    %37 = tpu.matmul %36, %18, %cst_13 {dimension_numbers = #tpu.dot_dimension_numbers<[1], [1], [0], [0], [0, 0, 1, 0], [], []>} : vector<8x32xf32>, vector<8x32xf32>, vector<8x8xf32> -> vector<8x8xf32>
    %cst_14 = arith.constant dense<0xFF800000> : vector<8xf32>
    %38 = vector.multi_reduction <maximumf>, %37, %cst_14 [1] : vector<8x8xf32> to vector<8xf32>
    %39 = vector.shape_cast %38 : vector<8xf32> to vector<8x1xf32>
    %40 = vector.broadcast %39 : vector<8x1xf32> to vector<8x8xf32>
    %41 = arith.subf %37, %40 : vector<8x8xf32>
    %42 = math.exp %41 : vector<8x8xf32>
    %cst_15 = arith.constant dense<0.000000e+00> : vector<8xf32>
    %43 = vector.multi_reduction <add>, %42, %cst_15 [1] : vector<8x8xf32> to vector<8xf32>
    %44 = vector.shape_cast %43 : vector<8xf32> to vector<8x1xf32>
    %45 = tpu.reciprocal %44 : vector<8x1xf32> -> vector<8x1xf32>
    %46 = vector.broadcast %45 : vector<8x1xf32> to vector<8x8xf32>
    %47 = arith.mulf %42, %46 : vector<8x8xf32>
    %48 = vector.extract_strided_slice %19 {offsets = [0, 32], sizes = [8, 32], strides = [1, 1]} : vector<8x128xf32> to vector<8x32xf32>
    %cst_16 = arith.constant dense<0.000000e+00> : vector<8x32xf32>
    %49 = tpu.matmul %47, %48, %cst_16 {dimension_numbers = #tpu.dot_dimension_numbers<[1], [0], [0], [1], [0, 0, 1, 1], [], []>} : vector<8x8xf32>, vector<8x32xf32>, vector<8x32xf32> -> vector<8x32xf32>
    %50 = arith.addf %35, %49 : vector<8x32xf32>
    %51 = vector.extract_strided_slice %17 {offsets = [0, 64], sizes = [8, 32], strides = [1, 1]} : vector<8x128xf32> to vector<8x32xf32>
    %cst_17 = arith.constant dense<0.000000e+00> : vector<8x8xf32>
    %52 = tpu.matmul %51, %18, %cst_17 {dimension_numbers = #tpu.dot_dimension_numbers<[1], [1], [0], [0], [0, 0, 1, 0], [], []>} : vector<8x32xf32>, vector<8x32xf32>, vector<8x8xf32> -> vector<8x8xf32>
    %cst_18 = arith.constant dense<0xFF800000> : vector<8xf32>
    %53 = vector.multi_reduction <maximumf>, %52, %cst_18 [1] : vector<8x8xf32> to vector<8xf32>
    %54 = vector.shape_cast %53 : vector<8xf32> to vector<8x1xf32>
    %55 = vector.broadcast %54 : vector<8x1xf32> to vector<8x8xf32>
    %56 = arith.subf %52, %55 : vector<8x8xf32>
    %57 = math.exp %56 : vector<8x8xf32>
    %cst_19 = arith.constant dense<0.000000e+00> : vector<8xf32>
    %58 = vector.multi_reduction <add>, %57, %cst_19 [1] : vector<8x8xf32> to vector<8xf32>
    %59 = vector.shape_cast %58 : vector<8xf32> to vector<8x1xf32>
    %60 = tpu.reciprocal %59 : vector<8x1xf32> -> vector<8x1xf32>
    %61 = vector.broadcast %60 : vector<8x1xf32> to vector<8x8xf32>
    %62 = arith.mulf %57, %61 : vector<8x8xf32>
    %63 = vector.extract_strided_slice %19 {offsets = [0, 64], sizes = [8, 32], strides = [1, 1]} : vector<8x128xf32> to vector<8x32xf32>
    %cst_20 = arith.constant dense<0.000000e+00> : vector<8x32xf32>
    %64 = tpu.matmul %62, %63, %cst_20 {dimension_numbers = #tpu.dot_dimension_numbers<[1], [0], [0], [1], [0, 0, 1, 1], [], []>} : vector<8x8xf32>, vector<8x32xf32>, vector<8x32xf32> -> vector<8x32xf32>
    %65 = arith.addf %50, %64 : vector<8x32xf32>
    %66 = vector.extract_strided_slice %17 {offsets = [0, 96], sizes = [8, 32], strides = [1, 1]} : vector<8x128xf32> to vector<8x32xf32>
    %cst_21 = arith.constant dense<0.000000e+00> : vector<8x8xf32>
    %67 = tpu.matmul %66, %18, %cst_21 {dimension_numbers = #tpu.dot_dimension_numbers<[1], [1], [0], [0], [0, 0, 1, 0], [], []>} : vector<8x32xf32>, vector<8x32xf32>, vector<8x8xf32> -> vector<8x8xf32>
    %cst_22 = arith.constant dense<0xFF800000> : vector<8xf32>
    %68 = vector.multi_reduction <maximumf>, %67, %cst_22 [1] : vector<8x8xf32> to vector<8xf32>
    %69 = vector.shape_cast %68 : vector<8xf32> to vector<8x1xf32>
    %70 = vector.broadcast %69 : vector<8x1xf32> to vector<8x8xf32>
    %71 = arith.subf %67, %70 : vector<8x8xf32>
    %72 = math.exp %71 : vector<8x8xf32>
    %cst_23 = arith.constant dense<0.000000e+00> : vector<8xf32>
    %73 = vector.multi_reduction <add>, %72, %cst_23 [1] : vector<8x8xf32> to vector<8xf32>
    %74 = vector.shape_cast %73 : vector<8xf32> to vector<8x1xf32>
    %75 = tpu.reciprocal %74 : vector<8x1xf32> -> vector<8x1xf32>
    %76 = vector.broadcast %75 : vector<8x1xf32> to vector<8x8xf32>
    %77 = arith.mulf %72, %76 : vector<8x8xf32>
    %78 = vector.extract_strided_slice %19 {offsets = [0, 96], sizes = [8, 32], strides = [1, 1]} : vector<8x128xf32> to vector<8x32xf32>
    %cst_24 = arith.constant dense<0.000000e+00> : vector<8x32xf32>
    %79 = tpu.matmul %77, %78, %cst_24 {dimension_numbers = #tpu.dot_dimension_numbers<[1], [0], [0], [1], [0, 0, 1, 1], [], []>} : vector<8x8xf32>, vector<8x32xf32>, vector<8x32xf32> -> vector<8x32xf32>
    %80 = arith.addf %65, %79 : vector<8x32xf32>
    %81 = vector.extract_strided_slice %15 {offsets = [8, 0], sizes = [8, 128], strides = [1, 1]} : vector<16x128xf32> to vector<8x128xf32>
    %82 = vector.extract_strided_slice %12 {offsets = [8, 0], sizes = [8, 32], strides = [1, 1]} : vector<16x32xf32> to vector<8x32xf32>
    %83 = vector.extract_strided_slice %16 {offsets = [8, 0], sizes = [8, 128], strides = [1, 1]} : vector<16x128xf32> to vector<8x128xf32>
    %cst_25 = arith.constant 0.000000e+00 : f32
    %84 = vector.broadcast %cst_25 : f32 to vector<8x32xf32>
    %85 = vector.extract_strided_slice %81 {offsets = [0, 0], sizes = [8, 32], strides = [1, 1]} : vector<8x128xf32> to vector<8x32xf32>
    %cst_26 = arith.constant dense<0.000000e+00> : vector<8x8xf32>
    %86 = tpu.matmul %85, %82, %cst_26 {dimension_numbers = #tpu.dot_dimension_numbers<[1], [1], [0], [0], [0, 0, 1, 0], [], []>} : vector<8x32xf32>, vector<8x32xf32>, vector<8x8xf32> -> vector<8x8xf32>
    %cst_27 = arith.constant dense<0xFF800000> : vector<8xf32>
    %87 = vector.multi_reduction <maximumf>, %86, %cst_27 [1] : vector<8x8xf32> to vector<8xf32>
    %88 = vector.shape_cast %87 : vector<8xf32> to vector<8x1xf32>
    %89 = vector.broadcast %88 : vector<8x1xf32> to vector<8x8xf32>
    %90 = arith.subf %86, %89 : vector<8x8xf32>
    %91 = math.exp %90 : vector<8x8xf32>
    %cst_28 = arith.constant dense<0.000000e+00> : vector<8xf32>
    %92 = vector.multi_reduction <add>, %91, %cst_28 [1] : vector<8x8xf32> to vector<8xf32>
    %93 = vector.shape_cast %92 : vector<8xf32> to vector<8x1xf32>
    %94 = tpu.reciprocal %93 : vector<8x1xf32> -> vector<8x1xf32>
    %95 = vector.broadcast %94 : vector<8x1xf32> to vector<8x8xf32>
    %96 = arith.mulf %91, %95 : vector<8x8xf32>
    %97 = vector.extract_strided_slice %83 {offsets = [0, 0], sizes = [8, 32], strides = [1, 1]} : vector<8x128xf32> to vector<8x32xf32>
    %cst_29 = arith.constant dense<0.000000e+00> : vector<8x32xf32>
    %98 = tpu.matmul %96, %97, %cst_29 {dimension_numbers = #tpu.dot_dimension_numbers<[1], [0], [0], [1], [0, 0, 1, 1], [], []>} : vector<8x8xf32>, vector<8x32xf32>, vector<8x32xf32> -> vector<8x32xf32>
    %99 = arith.addf %84, %98 : vector<8x32xf32>
    %100 = vector.extract_strided_slice %81 {offsets = [0, 32], sizes = [8, 32], strides = [1, 1]} : vector<8x128xf32> to vector<8x32xf32>
    %cst_30 = arith.constant dense<0.000000e+00> : vector<8x8xf32>
    %101 = tpu.matmul %100, %82, %cst_30 {dimension_numbers = #tpu.dot_dimension_numbers<[1], [1], [0], [0], [0, 0, 1, 0], [], []>} : vector<8x32xf32>, vector<8x32xf32>, vector<8x8xf32> -> vector<8x8xf32>
    %cst_31 = arith.constant dense<0xFF800000> : vector<8xf32>
    %102 = vector.multi_reduction <maximumf>, %101, %cst_31 [1] : vector<8x8xf32> to vector<8xf32>
    %103 = vector.shape_cast %102 : vector<8xf32> to vector<8x1xf32>
    %104 = vector.broadcast %103 : vector<8x1xf32> to vector<8x8xf32>
    %105 = arith.subf %101, %104 : vector<8x8xf32>
    %106 = math.exp %105 : vector<8x8xf32>
    %cst_32 = arith.constant dense<0.000000e+00> : vector<8xf32>
    %107 = vector.multi_reduction <add>, %106, %cst_32 [1] : vector<8x8xf32> to vector<8xf32>
    %108 = vector.shape_cast %107 : vector<8xf32> to vector<8x1xf32>
    %109 = tpu.reciprocal %108 : vector<8x1xf32> -> vector<8x1xf32>
    %110 = vector.broadcast %109 : vector<8x1xf32> to vector<8x8xf32>
    %111 = arith.mulf %106, %110 : vector<8x8xf32>
    %112 = vector.extract_strided_slice %83 {offsets = [0, 32], sizes = [8, 32], strides = [1, 1]} : vector<8x128xf32> to vector<8x32xf32>
    %cst_33 = arith.constant dense<0.000000e+00> : vector<8x32xf32>
    %113 = tpu.matmul %111, %112, %cst_33 {dimension_numbers = #tpu.dot_dimension_numbers<[1], [0], [0], [1], [0, 0, 1, 1], [], []>} : vector<8x8xf32>, vector<8x32xf32>, vector<8x32xf32> -> vector<8x32xf32>
    %114 = arith.addf %99, %113 : vector<8x32xf32>
    %115 = vector.extract_strided_slice %81 {offsets = [0, 64], sizes = [8, 32], strides = [1, 1]} : vector<8x128xf32> to vector<8x32xf32>
    %cst_34 = arith.constant dense<0.000000e+00> : vector<8x8xf32>
    %116 = tpu.matmul %115, %82, %cst_34 {dimension_numbers = #tpu.dot_dimension_numbers<[1], [1], [0], [0], [0, 0, 1, 0], [], []>} : vector<8x32xf32>, vector<8x32xf32>, vector<8x8xf32> -> vector<8x8xf32>
    %cst_35 = arith.constant dense<0xFF800000> : vector<8xf32>
    %117 = vector.multi_reduction <maximumf>, %116, %cst_35 [1] : vector<8x8xf32> to vector<8xf32>
    %118 = vector.shape_cast %117 : vector<8xf32> to vector<8x1xf32>
    %119 = vector.broadcast %118 : vector<8x1xf32> to vector<8x8xf32>
    %120 = arith.subf %116, %119 : vector<8x8xf32>
    %121 = math.exp %120 : vector<8x8xf32>
    %cst_36 = arith.constant dense<0.000000e+00> : vector<8xf32>
    %122 = vector.multi_reduction <add>, %121, %cst_36 [1] : vector<8x8xf32> to vector<8xf32>
    %123 = vector.shape_cast %122 : vector<8xf32> to vector<8x1xf32>
    %124 = tpu.reciprocal %123 : vector<8x1xf32> -> vector<8x1xf32>
    %125 = vector.broadcast %124 : vector<8x1xf32> to vector<8x8xf32>
    %126 = arith.mulf %121, %125 : vector<8x8xf32>
    %127 = vector.extract_strided_slice %83 {offsets = [0, 64], sizes = [8, 32], strides = [1, 1]} : vector<8x128xf32> to vector<8x32xf32>
    %cst_37 = arith.constant dense<0.000000e+00> : vector<8x32xf32>
    %128 = tpu.matmul %126, %127, %cst_37 {dimension_numbers = #tpu.dot_dimension_numbers<[1], [0], [0], [1], [0, 0, 1, 1], [], []>} : vector<8x8xf32>, vector<8x32xf32>, vector<8x32xf32> -> vector<8x32xf32>
    %129 = arith.addf %114, %128 : vector<8x32xf32>
    %130 = vector.extract_strided_slice %81 {offsets = [0, 96], sizes = [8, 32], strides = [1, 1]} : vector<8x128xf32> to vector<8x32xf32>
    %cst_38 = arith.constant dense<0.000000e+00> : vector<8x8xf32>
    %131 = tpu.matmul %130, %82, %cst_38 {dimension_numbers = #tpu.dot_dimension_numbers<[1], [1], [0], [0], [0, 0, 1, 0], [], []>} : vector<8x32xf32>, vector<8x32xf32>, vector<8x8xf32> -> vector<8x8xf32>
    %cst_39 = arith.constant dense<0xFF800000> : vector<8xf32>
    %132 = vector.multi_reduction <maximumf>, %131, %cst_39 [1] : vector<8x8xf32> to vector<8xf32>
    %133 = vector.shape_cast %132 : vector<8xf32> to vector<8x1xf32>
    %134 = vector.broadcast %133 : vector<8x1xf32> to vector<8x8xf32>
    %135 = arith.subf %131, %134 : vector<8x8xf32>
    %136 = math.exp %135 : vector<8x8xf32>
    %cst_40 = arith.constant dense<0.000000e+00> : vector<8xf32>
    %137 = vector.multi_reduction <add>, %136, %cst_40 [1] : vector<8x8xf32> to vector<8xf32>
    %138 = vector.shape_cast %137 : vector<8xf32> to vector<8x1xf32>
    %139 = tpu.reciprocal %138 : vector<8x1xf32> -> vector<8x1xf32>
    %140 = vector.broadcast %139 : vector<8x1xf32> to vector<8x8xf32>
    %141 = arith.mulf %136, %140 : vector<8x8xf32>
    %142 = vector.extract_strided_slice %83 {offsets = [0, 96], sizes = [8, 32], strides = [1, 1]} : vector<8x128xf32> to vector<8x32xf32>
    %cst_41 = arith.constant dense<0.000000e+00> : vector<8x32xf32>
    %143 = tpu.matmul %141, %142, %cst_41 {dimension_numbers = #tpu.dot_dimension_numbers<[1], [0], [0], [1], [0, 0, 1, 1], [], []>} : vector<8x8xf32>, vector<8x32xf32>, vector<8x32xf32> -> vector<8x32xf32>
    %144 = arith.addf %129, %143 : vector<8x32xf32>
    %145 = tpu.concatenate %80, %144 in 0 : vector<8x32xf32>, vector<8x32xf32> -> vector<16x32xf32>
    %146 = arith.addf %145, %12 : vector<16x32xf32>
    %147 = arith.addf %12, %146 : vector<16x32xf32>
    %cst_42 = arith.constant dense<0.000000e+00> : vector<16xf32>
    %148 = vector.multi_reduction <add>, %147, %cst_42 [1] : vector<16x32xf32> to vector<16xf32>
    %149 = vector.shape_cast %148 : vector<16xf32> to vector<16x1xf32>
    %cst_43 = arith.constant 3.200000e+01 : f32
    %150 = vector.broadcast %cst_43 : f32 to vector<16x1xf32>
    %151 = arith.divf %149, %150 : vector<16x1xf32>
    %152 = vector.broadcast %151 : vector<16x1xf32> to vector<16x32xf32>
    %153 = arith.subf %147, %152 : vector<16x32xf32>
    %154 = arith.mulf %153, %153 : vector<16x32xf32>
    %cst_44 = arith.constant dense<0.000000e+00> : vector<16xf32>
    %155 = vector.multi_reduction <add>, %154, %cst_44 [1] : vector<16x32xf32> to vector<16xf32>
    %156 = vector.shape_cast %155 : vector<16xf32> to vector<16x1xf32>
    %cst_45 = arith.constant 3.200000e+01 : f32
    %157 = vector.broadcast %cst_45 : f32 to vector<16x1xf32>
    %158 = arith.divf %156, %157 : vector<16x1xf32>
    %159 = vector.broadcast %151 : vector<16x1xf32> to vector<16x32xf32>
    %160 = arith.subf %147, %159 : vector<16x32xf32>
    %cst_46 = arith.constant 9.99999974E-6 : f32
    %161 = vector.broadcast %cst_46 : f32 to vector<16x1xf32>
    %162 = arith.addf %158, %161 : vector<16x1xf32>
    %163 = math.rsqrt %162 : vector<16x1xf32>
    %164 = vector.broadcast %163 : vector<16x1xf32> to vector<16x32xf32>
    %165 = arith.mulf %160, %164 : vector<16x32xf32>
    %166 = vector.broadcast %3 : vector<1x32xf32> to vector<16x32xf32>
    %167 = arith.mulf %165, %166 : vector<16x32xf32>
    %168 = vector.broadcast %4 : vector<1x32xf32> to vector<16x32xf32>
    %169 = arith.addf %167, %168 : vector<16x32xf32>
    %170 = arith.addf %169, %9 : vector<16x32xf32>
    %c0_47 = arith.constant 0 : index
    %c0_48 = arith.constant 0 : index
    %171 = vector.load %arg2[%c0_47, %c0_48] : memref<24x32xf32, #tpu.memory_space<vmem>>, vector<24x32xf32>
    %172 = arith.addf %171, %10 : vector<24x32xf32>
    %c0_49 = arith.constant 0 : index
    %c256 = arith.constant 256 : index
    %173 = vector.load %arg4[%c0_49, %c256] : memref<32x768xf32, #tpu.memory_space<vmem>>, vector<32x128xf32>
    %cst_50 = arith.constant dense<0.000000e+00> : vector<16x128xf32>
    %174 = tpu.matmul %170, %173, %cst_50 {dimension_numbers = #tpu.dot_dimension_numbers<[1], [0], [0], [1], [0, 0, 1, 1], [], []>} : vector<16x32xf32>, vector<32x128xf32>, vector<16x128xf32> -> vector<16x128xf32>
    %c0_51 = arith.constant 0 : index
    %c384 = arith.constant 384 : index
    %175 = vector.load %arg4[%c0_51, %c384] : memref<32x768xf32, #tpu.memory_space<vmem>>, vector<32x128xf32>
    %cst_52 = arith.constant dense<0.000000e+00> : vector<24x128xf32>
    %176 = tpu.matmul %172, %175, %cst_52 {dimension_numbers = #tpu.dot_dimension_numbers<[1], [0], [0], [1], [0, 0, 1, 1], [], []>} : vector<24x32xf32>, vector<32x128xf32>, vector<24x128xf32> -> vector<24x128xf32>
    %177 = vector.extract_strided_slice %174 {offsets = [0, 0], sizes = [8, 128], strides = [1, 1]} : vector<16x128xf32> to vector<8x128xf32>
    %178 = vector.extract_strided_slice %172 {offsets = [0, 0], sizes = [12, 32], strides = [1, 1]} : vector<24x32xf32> to vector<12x32xf32>
    %179 = vector.extract_strided_slice %176 {offsets = [0, 0], sizes = [12, 128], strides = [1, 1]} : vector<24x128xf32> to vector<12x128xf32>
    %cst_53 = arith.constant 0.000000e+00 : f32
    %180 = vector.broadcast %cst_53 : f32 to vector<8x32xf32>
    %181 = vector.extract_strided_slice %177 {offsets = [0, 0], sizes = [8, 32], strides = [1, 1]} : vector<8x128xf32> to vector<8x32xf32>
    %cst_54 = arith.constant dense<0.000000e+00> : vector<8x12xf32>
    %182 = tpu.matmul %181, %178, %cst_54 {dimension_numbers = #tpu.dot_dimension_numbers<[1], [1], [0], [0], [0, 0, 1, 0], [], []>} : vector<8x32xf32>, vector<12x32xf32>, vector<8x12xf32> -> vector<8x12xf32>
    %cst_55 = arith.constant dense<0xFF800000> : vector<8xf32>
    %183 = vector.multi_reduction <maximumf>, %182, %cst_55 [1] : vector<8x12xf32> to vector<8xf32>
    %184 = vector.shape_cast %183 : vector<8xf32> to vector<8x1xf32>
    %185 = vector.broadcast %184 : vector<8x1xf32> to vector<8x12xf32>
    %186 = arith.subf %182, %185 : vector<8x12xf32>
    %187 = math.exp %186 : vector<8x12xf32>
    %cst_56 = arith.constant dense<0.000000e+00> : vector<8xf32>
    %188 = vector.multi_reduction <add>, %187, %cst_56 [1] : vector<8x12xf32> to vector<8xf32>
    %189 = vector.shape_cast %188 : vector<8xf32> to vector<8x1xf32>
    %190 = tpu.reciprocal %189 : vector<8x1xf32> -> vector<8x1xf32>
    %191 = vector.broadcast %190 : vector<8x1xf32> to vector<8x12xf32>
    %192 = arith.mulf %187, %191 : vector<8x12xf32>
    %193 = vector.extract_strided_slice %179 {offsets = [0, 0], sizes = [12, 32], strides = [1, 1]} : vector<12x128xf32> to vector<12x32xf32>
    %cst_57 = arith.constant dense<0.000000e+00> : vector<8x32xf32>
    %194 = tpu.matmul %192, %193, %cst_57 {dimension_numbers = #tpu.dot_dimension_numbers<[1], [0], [0], [1], [0, 0, 1, 1], [], []>} : vector<8x12xf32>, vector<12x32xf32>, vector<8x32xf32> -> vector<8x32xf32>
    %195 = arith.addf %180, %194 : vector<8x32xf32>
    %196 = vector.extract_strided_slice %177 {offsets = [0, 32], sizes = [8, 32], strides = [1, 1]} : vector<8x128xf32> to vector<8x32xf32>
    %cst_58 = arith.constant dense<0.000000e+00> : vector<8x12xf32>
    %197 = tpu.matmul %196, %178, %cst_58 {dimension_numbers = #tpu.dot_dimension_numbers<[1], [1], [0], [0], [0, 0, 1, 0], [], []>} : vector<8x32xf32>, vector<12x32xf32>, vector<8x12xf32> -> vector<8x12xf32>
    %cst_59 = arith.constant dense<0xFF800000> : vector<8xf32>
    %198 = vector.multi_reduction <maximumf>, %197, %cst_59 [1] : vector<8x12xf32> to vector<8xf32>
    %199 = vector.shape_cast %198 : vector<8xf32> to vector<8x1xf32>
    %200 = vector.broadcast %199 : vector<8x1xf32> to vector<8x12xf32>
    %201 = arith.subf %197, %200 : vector<8x12xf32>
    %202 = math.exp %201 : vector<8x12xf32>
    %cst_60 = arith.constant dense<0.000000e+00> : vector<8xf32>
    %203 = vector.multi_reduction <add>, %202, %cst_60 [1] : vector<8x12xf32> to vector<8xf32>
    %204 = vector.shape_cast %203 : vector<8xf32> to vector<8x1xf32>
    %205 = tpu.reciprocal %204 : vector<8x1xf32> -> vector<8x1xf32>
    %206 = vector.broadcast %205 : vector<8x1xf32> to vector<8x12xf32>
    %207 = arith.mulf %202, %206 : vector<8x12xf32>
    %208 = vector.extract_strided_slice %179 {offsets = [0, 32], sizes = [12, 32], strides = [1, 1]} : vector<12x128xf32> to vector<12x32xf32>
    %cst_61 = arith.constant dense<0.000000e+00> : vector<8x32xf32>
    %209 = tpu.matmul %207, %208, %cst_61 {dimension_numbers = #tpu.dot_dimension_numbers<[1], [0], [0], [1], [0, 0, 1, 1], [], []>} : vector<8x12xf32>, vector<12x32xf32>, vector<8x32xf32> -> vector<8x32xf32>
    %210 = arith.addf %195, %209 : vector<8x32xf32>
    %211 = vector.extract_strided_slice %177 {offsets = [0, 64], sizes = [8, 32], strides = [1, 1]} : vector<8x128xf32> to vector<8x32xf32>
    %cst_62 = arith.constant dense<0.000000e+00> : vector<8x12xf32>
    %212 = tpu.matmul %211, %178, %cst_62 {dimension_numbers = #tpu.dot_dimension_numbers<[1], [1], [0], [0], [0, 0, 1, 0], [], []>} : vector<8x32xf32>, vector<12x32xf32>, vector<8x12xf32> -> vector<8x12xf32>
    %cst_63 = arith.constant dense<0xFF800000> : vector<8xf32>
    %213 = vector.multi_reduction <maximumf>, %212, %cst_63 [1] : vector<8x12xf32> to vector<8xf32>
    %214 = vector.shape_cast %213 : vector<8xf32> to vector<8x1xf32>
    %215 = vector.broadcast %214 : vector<8x1xf32> to vector<8x12xf32>
    %216 = arith.subf %212, %215 : vector<8x12xf32>
    %217 = math.exp %216 : vector<8x12xf32>
    %cst_64 = arith.constant dense<0.000000e+00> : vector<8xf32>
    %218 = vector.multi_reduction <add>, %217, %cst_64 [1] : vector<8x12xf32> to vector<8xf32>
    %219 = vector.shape_cast %218 : vector<8xf32> to vector<8x1xf32>
    %220 = tpu.reciprocal %219 : vector<8x1xf32> -> vector<8x1xf32>
    %221 = vector.broadcast %220 : vector<8x1xf32> to vector<8x12xf32>
    %222 = arith.mulf %217, %221 : vector<8x12xf32>
    %223 = vector.extract_strided_slice %179 {offsets = [0, 64], sizes = [12, 32], strides = [1, 1]} : vector<12x128xf32> to vector<12x32xf32>
    %cst_65 = arith.constant dense<0.000000e+00> : vector<8x32xf32>
    %224 = tpu.matmul %222, %223, %cst_65 {dimension_numbers = #tpu.dot_dimension_numbers<[1], [0], [0], [1], [0, 0, 1, 1], [], []>} : vector<8x12xf32>, vector<12x32xf32>, vector<8x32xf32> -> vector<8x32xf32>
    %225 = arith.addf %210, %224 : vector<8x32xf32>
    %226 = vector.extract_strided_slice %177 {offsets = [0, 96], sizes = [8, 32], strides = [1, 1]} : vector<8x128xf32> to vector<8x32xf32>
    %cst_66 = arith.constant dense<0.000000e+00> : vector<8x12xf32>
    %227 = tpu.matmul %226, %178, %cst_66 {dimension_numbers = #tpu.dot_dimension_numbers<[1], [1], [0], [0], [0, 0, 1, 0], [], []>} : vector<8x32xf32>, vector<12x32xf32>, vector<8x12xf32> -> vector<8x12xf32>
    %cst_67 = arith.constant dense<0xFF800000> : vector<8xf32>
    %228 = vector.multi_reduction <maximumf>, %227, %cst_67 [1] : vector<8x12xf32> to vector<8xf32>
    %229 = vector.shape_cast %228 : vector<8xf32> to vector<8x1xf32>
    %230 = vector.broadcast %229 : vector<8x1xf32> to vector<8x12xf32>
    %231 = arith.subf %227, %230 : vector<8x12xf32>
    %232 = math.exp %231 : vector<8x12xf32>
    %cst_68 = arith.constant dense<0.000000e+00> : vector<8xf32>
    %233 = vector.multi_reduction <add>, %232, %cst_68 [1] : vector<8x12xf32> to vector<8xf32>
    %234 = vector.shape_cast %233 : vector<8xf32> to vector<8x1xf32>
    %235 = tpu.reciprocal %234 : vector<8x1xf32> -> vector<8x1xf32>
    %236 = vector.broadcast %235 : vector<8x1xf32> to vector<8x12xf32>
    %237 = arith.mulf %232, %236 : vector<8x12xf32>
    %238 = vector.extract_strided_slice %179 {offsets = [0, 96], sizes = [12, 32], strides = [1, 1]} : vector<12x128xf32> to vector<12x32xf32>
    %cst_69 = arith.constant dense<0.000000e+00> : vector<8x32xf32>
    %239 = tpu.matmul %237, %238, %cst_69 {dimension_numbers = #tpu.dot_dimension_numbers<[1], [0], [0], [1], [0, 0, 1, 1], [], []>} : vector<8x12xf32>, vector<12x32xf32>, vector<8x32xf32> -> vector<8x32xf32>
    %240 = arith.addf %225, %239 : vector<8x32xf32>
    %241 = vector.extract_strided_slice %174 {offsets = [8, 0], sizes = [8, 128], strides = [1, 1]} : vector<16x128xf32> to vector<8x128xf32>
    %242 = vector.extract_strided_slice %172 {offsets = [12, 0], sizes = [12, 32], strides = [1, 1]} : vector<24x32xf32> to vector<12x32xf32>
    %243 = vector.extract_strided_slice %176 {offsets = [12, 0], sizes = [12, 128], strides = [1, 1]} : vector<24x128xf32> to vector<12x128xf32>
    %cst_70 = arith.constant 0.000000e+00 : f32
    %244 = vector.broadcast %cst_70 : f32 to vector<8x32xf32>
    %245 = vector.extract_strided_slice %241 {offsets = [0, 0], sizes = [8, 32], strides = [1, 1]} : vector<8x128xf32> to vector<8x32xf32>
    %cst_71 = arith.constant dense<0.000000e+00> : vector<8x12xf32>
    %246 = tpu.matmul %245, %242, %cst_71 {dimension_numbers = #tpu.dot_dimension_numbers<[1], [1], [0], [0], [0, 0, 1, 0], [], []>} : vector<8x32xf32>, vector<12x32xf32>, vector<8x12xf32> -> vector<8x12xf32>
    %cst_72 = arith.constant dense<0xFF800000> : vector<8xf32>
    %247 = vector.multi_reduction <maximumf>, %246, %cst_72 [1] : vector<8x12xf32> to vector<8xf32>
    %248 = vector.shape_cast %247 : vector<8xf32> to vector<8x1xf32>
    %249 = vector.broadcast %248 : vector<8x1xf32> to vector<8x12xf32>
    %250 = arith.subf %246, %249 : vector<8x12xf32>
    %251 = math.exp %250 : vector<8x12xf32>
    %cst_73 = arith.constant dense<0.000000e+00> : vector<8xf32>
    %252 = vector.multi_reduction <add>, %251, %cst_73 [1] : vector<8x12xf32> to vector<8xf32>
    %253 = vector.shape_cast %252 : vector<8xf32> to vector<8x1xf32>
    %254 = tpu.reciprocal %253 : vector<8x1xf32> -> vector<8x1xf32>
    %255 = vector.broadcast %254 : vector<8x1xf32> to vector<8x12xf32>
    %256 = arith.mulf %251, %255 : vector<8x12xf32>
    %257 = vector.extract_strided_slice %243 {offsets = [0, 0], sizes = [12, 32], strides = [1, 1]} : vector<12x128xf32> to vector<12x32xf32>
    %cst_74 = arith.constant dense<0.000000e+00> : vector<8x32xf32>
    %258 = tpu.matmul %256, %257, %cst_74 {dimension_numbers = #tpu.dot_dimension_numbers<[1], [0], [0], [1], [0, 0, 1, 1], [], []>} : vector<8x12xf32>, vector<12x32xf32>, vector<8x32xf32> -> vector<8x32xf32>
    %259 = arith.addf %244, %258 : vector<8x32xf32>
    %260 = vector.extract_strided_slice %241 {offsets = [0, 32], sizes = [8, 32], strides = [1, 1]} : vector<8x128xf32> to vector<8x32xf32>
    %cst_75 = arith.constant dense<0.000000e+00> : vector<8x12xf32>
    %261 = tpu.matmul %260, %242, %cst_75 {dimension_numbers = #tpu.dot_dimension_numbers<[1], [1], [0], [0], [0, 0, 1, 0], [], []>} : vector<8x32xf32>, vector<12x32xf32>, vector<8x12xf32> -> vector<8x12xf32>
    %cst_76 = arith.constant dense<0xFF800000> : vector<8xf32>
    %262 = vector.multi_reduction <maximumf>, %261, %cst_76 [1] : vector<8x12xf32> to vector<8xf32>
    %263 = vector.shape_cast %262 : vector<8xf32> to vector<8x1xf32>
    %264 = vector.broadcast %263 : vector<8x1xf32> to vector<8x12xf32>
    %265 = arith.subf %261, %264 : vector<8x12xf32>
    %266 = math.exp %265 : vector<8x12xf32>
    %cst_77 = arith.constant dense<0.000000e+00> : vector<8xf32>
    %267 = vector.multi_reduction <add>, %266, %cst_77 [1] : vector<8x12xf32> to vector<8xf32>
    %268 = vector.shape_cast %267 : vector<8xf32> to vector<8x1xf32>
    %269 = tpu.reciprocal %268 : vector<8x1xf32> -> vector<8x1xf32>
    %270 = vector.broadcast %269 : vector<8x1xf32> to vector<8x12xf32>
    %271 = arith.mulf %266, %270 : vector<8x12xf32>
    %272 = vector.extract_strided_slice %243 {offsets = [0, 32], sizes = [12, 32], strides = [1, 1]} : vector<12x128xf32> to vector<12x32xf32>
    %cst_78 = arith.constant dense<0.000000e+00> : vector<8x32xf32>
    %273 = tpu.matmul %271, %272, %cst_78 {dimension_numbers = #tpu.dot_dimension_numbers<[1], [0], [0], [1], [0, 0, 1, 1], [], []>} : vector<8x12xf32>, vector<12x32xf32>, vector<8x32xf32> -> vector<8x32xf32>
    %274 = arith.addf %259, %273 : vector<8x32xf32>
    %275 = vector.extract_strided_slice %241 {offsets = [0, 64], sizes = [8, 32], strides = [1, 1]} : vector<8x128xf32> to vector<8x32xf32>
    %cst_79 = arith.constant dense<0.000000e+00> : vector<8x12xf32>
    %276 = tpu.matmul %275, %242, %cst_79 {dimension_numbers = #tpu.dot_dimension_numbers<[1], [1], [0], [0], [0, 0, 1, 0], [], []>} : vector<8x32xf32>, vector<12x32xf32>, vector<8x12xf32> -> vector<8x12xf32>
    %cst_80 = arith.constant dense<0xFF800000> : vector<8xf32>
    %277 = vector.multi_reduction <maximumf>, %276, %cst_80 [1] : vector<8x12xf32> to vector<8xf32>
    %278 = vector.shape_cast %277 : vector<8xf32> to vector<8x1xf32>
    %279 = vector.broadcast %278 : vector<8x1xf32> to vector<8x12xf32>
    %280 = arith.subf %276, %279 : vector<8x12xf32>
    %281 = math.exp %280 : vector<8x12xf32>
    %cst_81 = arith.constant dense<0.000000e+00> : vector<8xf32>
    %282 = vector.multi_reduction <add>, %281, %cst_81 [1] : vector<8x12xf32> to vector<8xf32>
    %283 = vector.shape_cast %282 : vector<8xf32> to vector<8x1xf32>
    %284 = tpu.reciprocal %283 : vector<8x1xf32> -> vector<8x1xf32>
    %285 = vector.broadcast %284 : vector<8x1xf32> to vector<8x12xf32>
    %286 = arith.mulf %281, %285 : vector<8x12xf32>
    %287 = vector.extract_strided_slice %243 {offsets = [0, 64], sizes = [12, 32], strides = [1, 1]} : vector<12x128xf32> to vector<12x32xf32>
    %cst_82 = arith.constant dense<0.000000e+00> : vector<8x32xf32>
    %288 = tpu.matmul %286, %287, %cst_82 {dimension_numbers = #tpu.dot_dimension_numbers<[1], [0], [0], [1], [0, 0, 1, 1], [], []>} : vector<8x12xf32>, vector<12x32xf32>, vector<8x32xf32> -> vector<8x32xf32>
    %289 = arith.addf %274, %288 : vector<8x32xf32>
    %290 = vector.extract_strided_slice %241 {offsets = [0, 96], sizes = [8, 32], strides = [1, 1]} : vector<8x128xf32> to vector<8x32xf32>
    %cst_83 = arith.constant dense<0.000000e+00> : vector<8x12xf32>
    %291 = tpu.matmul %290, %242, %cst_83 {dimension_numbers = #tpu.dot_dimension_numbers<[1], [1], [0], [0], [0, 0, 1, 0], [], []>} : vector<8x32xf32>, vector<12x32xf32>, vector<8x12xf32> -> vector<8x12xf32>
    %cst_84 = arith.constant dense<0xFF800000> : vector<8xf32>
    %292 = vector.multi_reduction <maximumf>, %291, %cst_84 [1] : vector<8x12xf32> to vector<8xf32>
    %293 = vector.shape_cast %292 : vector<8xf32> to vector<8x1xf32>
    %294 = vector.broadcast %293 : vector<8x1xf32> to vector<8x12xf32>
    %295 = arith.subf %291, %294 : vector<8x12xf32>
    %296 = math.exp %295 : vector<8x12xf32>
    %cst_85 = arith.constant dense<0.000000e+00> : vector<8xf32>
    %297 = vector.multi_reduction <add>, %296, %cst_85 [1] : vector<8x12xf32> to vector<8xf32>
    %298 = vector.shape_cast %297 : vector<8xf32> to vector<8x1xf32>
    %299 = tpu.reciprocal %298 : vector<8x1xf32> -> vector<8x1xf32>
    %300 = vector.broadcast %299 : vector<8x1xf32> to vector<8x12xf32>
    %301 = arith.mulf %296, %300 : vector<8x12xf32>
    %302 = vector.extract_strided_slice %243 {offsets = [0, 96], sizes = [12, 32], strides = [1, 1]} : vector<12x128xf32> to vector<12x32xf32>
    %cst_86 = arith.constant dense<0.000000e+00> : vector<8x32xf32>
    %303 = tpu.matmul %301, %302, %cst_86 {dimension_numbers = #tpu.dot_dimension_numbers<[1], [0], [0], [1], [0, 0, 1, 1], [], []>} : vector<8x12xf32>, vector<12x32xf32>, vector<8x32xf32> -> vector<8x32xf32>
    %304 = arith.addf %289, %303 : vector<8x32xf32>
    %305 = tpu.concatenate %240, %304 in 0 : vector<8x32xf32>, vector<8x32xf32> -> vector<16x32xf32>
    %306 = arith.addf %305, %170 : vector<16x32xf32>
    %307 = arith.addf %170, %306 : vector<16x32xf32>
    %cst_87 = arith.constant dense<0.000000e+00> : vector<16xf32>
    %308 = vector.multi_reduction <add>, %307, %cst_87 [1] : vector<16x32xf32> to vector<16xf32>
    %309 = vector.shape_cast %308 : vector<16xf32> to vector<16x1xf32>
    %cst_88 = arith.constant 3.200000e+01 : f32
    %310 = vector.broadcast %cst_88 : f32 to vector<16x1xf32>
    %311 = arith.divf %309, %310 : vector<16x1xf32>
    %312 = vector.broadcast %311 : vector<16x1xf32> to vector<16x32xf32>
    %313 = arith.subf %307, %312 : vector<16x32xf32>
    %314 = arith.mulf %313, %313 : vector<16x32xf32>
    %cst_89 = arith.constant dense<0.000000e+00> : vector<16xf32>
    %315 = vector.multi_reduction <add>, %314, %cst_89 [1] : vector<16x32xf32> to vector<16xf32>
    %316 = vector.shape_cast %315 : vector<16xf32> to vector<16x1xf32>
    %cst_90 = arith.constant 3.200000e+01 : f32
    %317 = vector.broadcast %cst_90 : f32 to vector<16x1xf32>
    %318 = arith.divf %316, %317 : vector<16x1xf32>
    %319 = vector.broadcast %311 : vector<16x1xf32> to vector<16x32xf32>
    %320 = arith.subf %307, %319 : vector<16x32xf32>
    %cst_91 = arith.constant 9.99999974E-6 : f32
    %321 = vector.broadcast %cst_91 : f32 to vector<16x1xf32>
    %322 = arith.addf %318, %321 : vector<16x1xf32>
    %323 = math.rsqrt %322 : vector<16x1xf32>
    %324 = vector.broadcast %323 : vector<16x1xf32> to vector<16x32xf32>
    %325 = arith.mulf %320, %324 : vector<16x32xf32>
    %326 = vector.broadcast %5 : vector<1x32xf32> to vector<16x32xf32>
    %327 = arith.mulf %325, %326 : vector<16x32xf32>
    %328 = vector.broadcast %6 : vector<1x32xf32> to vector<16x32xf32>
    %329 = arith.addf %327, %328 : vector<16x32xf32>
    %c0_92 = arith.constant 0 : index
    %c512 = arith.constant 512 : index
    %330 = vector.load %arg4[%c0_92, %c512] : memref<32x768xf32, #tpu.memory_space<vmem>>, vector<32x128xf32>
    %cst_93 = arith.constant dense<0.000000e+00> : vector<16x128xf32>
    %331 = tpu.matmul %329, %330, %cst_93 {dimension_numbers = #tpu.dot_dimension_numbers<[1], [0], [0], [1], [0, 0, 1, 1], [], []>} : vector<16x32xf32>, vector<32x128xf32>, vector<16x128xf32> -> vector<16x128xf32>
    %332 = vector.broadcast %1 : vector<1x128xf32> to vector<16x128xf32>
    %333 = arith.addf %331, %332 : vector<16x128xf32>
    %cst_94 = arith.constant 0.000000e+00 : f32
    %334 = vector.broadcast %cst_94 : f32 to vector<16x128xf32>
    %335 = arith.maximumf %333, %334 : vector<16x128xf32>
    %c0_95 = arith.constant 0 : index
    %c640 = arith.constant 640 : index
    %336 = vector.load %arg4[%c0_95, %c640] : memref<32x768xf32, #tpu.memory_space<vmem>>, vector<32x128xf32>
    %cst_96 = arith.constant dense<0.000000e+00> : vector<16x32xf32>
    %337 = tpu.matmul %335, %336, %cst_96 {dimension_numbers = #tpu.dot_dimension_numbers<[1], [1], [0], [0], [0, 0, 1, 0], [], []>} : vector<16x128xf32>, vector<32x128xf32>, vector<16x32xf32> -> vector<16x32xf32>
    %338 = vector.broadcast %2 : vector<1x32xf32> to vector<16x32xf32>
    %339 = arith.addf %337, %338 : vector<16x32xf32>
    %340 = arith.addf %329, %339 : vector<16x32xf32>
    %cst_97 = arith.constant dense<0.000000e+00> : vector<16xf32>
    %341 = vector.multi_reduction <add>, %340, %cst_97 [1] : vector<16x32xf32> to vector<16xf32>
    %342 = vector.shape_cast %341 : vector<16xf32> to vector<16x1xf32>
    %cst_98 = arith.constant 3.200000e+01 : f32
    %343 = vector.broadcast %cst_98 : f32 to vector<16x1xf32>
    %344 = arith.divf %342, %343 : vector<16x1xf32>
    %345 = vector.broadcast %344 : vector<16x1xf32> to vector<16x32xf32>
    %346 = arith.subf %340, %345 : vector<16x32xf32>
    %347 = arith.mulf %346, %346 : vector<16x32xf32>
    %cst_99 = arith.constant dense<0.000000e+00> : vector<16xf32>
    %348 = vector.multi_reduction <add>, %347, %cst_99 [1] : vector<16x32xf32> to vector<16xf32>
    %349 = vector.shape_cast %348 : vector<16xf32> to vector<16x1xf32>
    %cst_100 = arith.constant 3.200000e+01 : f32
    %350 = vector.broadcast %cst_100 : f32 to vector<16x1xf32>
    %351 = arith.divf %349, %350 : vector<16x1xf32>
    %352 = vector.broadcast %344 : vector<16x1xf32> to vector<16x32xf32>
    %353 = arith.subf %340, %352 : vector<16x32xf32>
    %cst_101 = arith.constant 9.99999974E-6 : f32
    %354 = vector.broadcast %cst_101 : f32 to vector<16x1xf32>
    %355 = arith.addf %351, %354 : vector<16x1xf32>
    %356 = math.rsqrt %355 : vector<16x1xf32>
    %357 = vector.broadcast %356 : vector<16x1xf32> to vector<16x32xf32>
    %358 = arith.mulf %353, %357 : vector<16x32xf32>
    %359 = vector.broadcast %7 : vector<1x32xf32> to vector<16x32xf32>
    %360 = arith.mulf %358, %359 : vector<16x32xf32>
    %361 = vector.broadcast %8 : vector<1x32xf32> to vector<16x32xf32>
    %362 = arith.addf %360, %361 : vector<16x32xf32>
    %c0_102 = arith.constant 0 : index
    %c0_103 = arith.constant 0 : index
    %363 = vector.load %arg6[%c0_102, %c0_103] : memref<16x32xf32, #tpu.memory_space<vmem>>, vector<16x32xf32>
    tpu.vector_store %arg6[%c0_102, %c0_103], %362 {strides = array<i32>} : memref<16x32xf32, #tpu.memory_space<vmem>>, vector<16x32xf32>,
    return
  }
  func.func @transform_0(%arg0: i32) -> (i32, i32) {
    %c0_i32 = arith.constant 0 : i32
    %c0_i32_0 = arith.constant 0 : i32
    return %arg0, %c0_i32 : i32, i32
  }
  func.func @transform_1(%arg0: i32) -> (i32, i32) {
    %c0_i32 = arith.constant 0 : i32
    %c0_i32_0 = arith.constant 0 : i32
    return %arg0, %c0_i32 : i32, i32
  }
  func.func @transform_2(%arg0: i32) -> (i32, i32) {
    %c0_i32 = arith.constant 0 : i32
    %c0_i32_0 = arith.constant 0 : i32
    %c0_i32_1 = arith.constant 0 : i32
    return %c0_i32, %c0_i32_0 : i32, i32
  }
  func.func @transform_3(%arg0: i32) -> (i32, i32) {
    %c0_i32 = arith.constant 0 : i32
    %c0_i32_0 = arith.constant 0 : i32
    %c0_i32_1 = arith.constant 0 : i32
    return %c0_i32, %c0_i32_0 : i32, i32
  }
  func.func @transform_4(%arg0: i32) -> (i32, i32) {
    %c0_i32 = arith.constant 0 : i32
    %c0_i32_0 = arith.constant 0 : i32
    %c0_i32_1 = arith.constant 0 : i32
    return %c0_i32, %c0_i32_0 : i32, i32
  }
  func.func @transform_5(%arg0: i32) -> (i32, i32) {
    %c0_i32 = arith.constant 0 : i32
    %c0_i32_0 = arith.constant 0 : i32
    return %arg0, %c0_i32 : i32, i32
  }
}

</mosaic_0001>

<llo_original>
// kernel: tpu_custom_call.1
$region0: #{tpu_custom_call.1}
  #allocation0 [shape = 'u32[]', space=smem, size = 0x4, offset = 0x4, fixed_abs, tag = 'smem constant byte address 0x4 - core index']
  #allocation1 [shape = 'u32[72,128]{1,0:T(1,128)}', space=vmem, size = 0x9000, scoped, tag = 'internal scratch']
  %s0 = inlined_call_operand.vmem [shape: f32[16,32], index: 0, kind: input, shape index: {}]
  %s1 = inlined_call_operand.vmem [shape: f32[24,32], index: 1, kind: input, shape index: {}]
  %s2 = inlined_call_operand.vmem [shape: f32[40,32], index: 2, kind: input, shape index: {}]
  %s3 = inlined_call_operand.hbm [shape: f32[32,768], index: 3, kind: input, shape index: {}]
  %s4 = inlined_call_operand.vmem [shape: f32[8,128], index: 4, kind: input, shape index: {}]
  %s5 = inlined_call_operand.hbm [shape: f32[16,32], index: 5, kind: output, shape index: {}]
  %s6 = sld [smem:[#allocation0]]
  $region34: #{tpu_custom_call.1} parent=0
    _
  %s8 = ssub.s32 1, %s6
  %s9 = scalar_select 0, %s8, %s6
  $region1: #{tpu_custom_call.1} parent=0
    #allocation2 [shape = 'u8[98304]{0}', space=vmem, size = 0x18000, scoped, tag = 'input window, operand 3, single buffered']
    #allocation3 [shape = 's32[1]{0}', space=sflag, size = 0x4, scoped, tag = 'scoped memory for tpu_custom_call.1']
    #allocation4 [shape = 's32[1]{0}', space=sflag, size = 0x4, scoped, tag = 'scoped memory for tpu_custom_call.1']
    #allocation5 [shape = 'u8[8192]{0}', space=vmem, size = 0x2000, scoped, tag = 'output window, operand 0, single buffered']
    %10 = vsyncpa [#allocation3], 0
    %11 = vsyncpa [#allocation4], 0
    // Predicated region
    $region2: #{tpu_custom_call.1} parent=1 // pred_check
      _
    $region3: #{tpu_custom_call.1} parent=1 // pred_check_branch
      %13 = sbr.rel (0) target = $region5
    $region4: #{tpu_custom_call.1} parent=1 // pred_region
      _
    $region5: #{tpu_custom_call.1} parent=1 // pred_fallthru
      _
    // Predicated region
    $region6: #{tpu_custom_call.1} parent=1 // pred_check
      _
    $region7: #{tpu_custom_call.1} parent=1 // pred_check_branch
      %15 = sbr.rel (0) target = $region9
    $region8: #{tpu_custom_call.1} parent=1 // pred_region
      _
    $region9: #{tpu_custom_call.1} parent=1 // pred_fallthru
      _
    // Predicated region
    $region10: #{tpu_custom_call.1} parent=1 // pred_check
      _
    $region11: #{tpu_custom_call.1} parent=1 // pred_check_branch
      %17 = sbr.rel (0) target = $region13
    $region12: #{tpu_custom_call.1} parent=1 // pred_region
      _
    $region13: #{tpu_custom_call.1} parent=1 // pred_fallthru
      _
    // Predicated region
    $region14: #{tpu_custom_call.1} parent=1 // pred_check
      _
    $region15: #{tpu_custom_call.1} parent=1 // pred_check_branch
      %19 = sbr.rel (0) target = $region17
    $region16: #{tpu_custom_call.1} parent=1 // pred_region
      %21 = vsyncadd [#allocation3], 0
      %s22 = sshll.u32 %s3, 4
      %s23 = int_to_ptr.hbm [resolvable:$true] %s22
      %s24 = sshll.u32 [#allocation2], 4
      %s25 = int_to_ptr.vmem [resolvable:$true] %s24
      %30 = dma.hbm_to_vmem [thread:$0]  %s23, 3072, %s25, [#allocation3], 768, 768, 48
    $region17: #{tpu_custom_call.1} parent=1 // pred_fallthru
      _
    // Predicated region
    $region18: #{tpu_custom_call.1} parent=1 // pred_check
      _
    $region19: #{tpu_custom_call.1} parent=1 // pred_check_branch
      %32 = sbr.rel (0) target = $region21
    $region20: #{tpu_custom_call.1} parent=1 // pred_region
      _
    $region21: #{tpu_custom_call.1} parent=1 // pred_fallthru
      _
    // Predicated region
    $region22: #{tpu_custom_call.1} parent=1 // pred_check
      _
    $region23: #{tpu_custom_call.1} parent=1 // pred_check_branch
      %34 = sbr.rel (0) target = $region25
    $region24: #{tpu_custom_call.1} parent=1 // pred_region
      %36 = dma.done [#allocation3], 3072
    $region25: #{tpu_custom_call.1} parent=1 // pred_fallthru
      _
    %v37 = vld [vmem:[%s4] sm:$0xff]
    %v38 = vld [vmem:[%s2] sm:$0xff]
    %v39 = vld [vmem:[%s2 + $0x8] sm:$0xff]
    %v40 = vld [vmem:[%s2 + $0x10] sm:$0xff]
    %v41 = vld [vmem:[%s2 + $0x18] sm:$0xff]
    %v42 = vld [vmem:[%s2 + $0x20] sm:$0xff]
    %v43 = vld [vmem:[%s0] sm:$0xff]
    %v44 = vld [vmem:[%s0 + $0x8] sm:$0xff]
    %v45 = vadd.f32 %v43, %v38
    %v46 = vadd.f32 %v44, %v39
    %v47 = vld [vmem:[#allocation2] sm:$0xff]
    %v48 = vld [vmem:[#allocation2 + $0x8] sm:$0xff]
    %v49 = vld [vmem:[#allocation2 + $0x30] sm:$0xff]
    %v50 = vld [vmem:[#allocation2 + $0x38] sm:$0xff]
    %v51 = vld [vmem:[#allocation2 + $0x60] sm:$0xff]
    %v52 = vld [vmem:[#allocation2 + $0x68] sm:$0xff]
    %v53 = vld [vmem:[#allocation2 + $0x90] sm:$0xff]
    %v54 = vld [vmem:[#allocation2 + $0x98] sm:$0xff]
    %vm55 = vcmask 261120
    %v57 = vsel %vm55, %v45, 0
    %v60 = vsel %vm55, %v46, 0
    %62 = vmatpush.msra.mxu0 0.0
    %63 = vmatpush.msra.mxu0 0.0
    %64 = vmatpush.msra.mxu0 0.0
    %65 = vmatpush.msra.mxu0 0.0
    %66 = vmatpush.msra.mxu0 0.0
    %67 = vmatpush.msra.mxu0 0.0
    %68 = vmatpush.msra.mxu0 0.0
    %69 = vmatpush.msra.mxu0 0.0
    %70 = vmatpush.msra.mxu0 0.0
    %71 = vmatpush.msra.mxu0 0.0
    %72 = vmatpush.msra.mxu0 0.0
    %73 = vmatpush.msra.mxu0 0.0
    %74 = vmatpush.msra.mxu0 %v53
    %75 = vmatpush.msra.mxu0 %v51
    %76 = vmatpush.msra.mxu0 %v49
    %77 = vmatpush.msra.mxu0 %v47
    %78 = vmatmul.f32.gmra.mxu0 %v57
    %v79 = vpop.f32.mrf.mxu0
    %v80 = vadd.f32 0.0, %v79
    %81 = vmatmul.f32.gmra.mxu0 %v60
    %v82 = vpop.f32.mrf.mxu0
    %v83 = vadd.f32 0.0, %v82
    %84 = vdwg.mxu0
    %85 = vmatpush.msra.mxu0 0.0
    %86 = vmatpush.msra.mxu0 0.0
    %87 = vmatpush.msra.mxu0 0.0
    %88 = vmatpush.msra.mxu0 0.0
    %89 = vmatpush.msra.mxu0 0.0
    %90 = vmatpush.msra.mxu0 0.0
    %91 = vmatpush.msra.mxu0 0.0
    %92 = vmatpush.msra.mxu0 0.0
    %93 = vmatpush.msra.mxu0 0.0
    %94 = vmatpush.msra.mxu0 0.0
    %95 = vmatpush.msra.mxu0 0.0
    %96 = vmatpush.msra.mxu0 0.0
    %97 = vmatpush.msra.mxu0 %v54
    %98 = vmatpush.msra.mxu0 %v52
    %99 = vmatpush.msra.mxu0 %v50
    %100 = vmatpush.msra.mxu0 %v48
    %101 = vmatmul.f32.gmra.mxu0 %v57
    %v102 = vpop.f32.mrf.mxu0
    %v103 = vadd.f32 0.0, %v102
    %104 = vmatmul.f32.gmra.mxu0 %v60
    %v105 = vpop.f32.mrf.mxu0
    %v106 = vadd.f32 0.0, %v105
    %107 = vdwg.mxu0
    %v109 = vsel %vm55, %v80, 0
    %111 = vmatpush.xpose.msra.mxu0 0.0
    %112 = vmatpush.xpose.msra.mxu0 0.0
    %113 = vmatpush.xpose.msra.mxu0 0.0
    %114 = vmatpush.xpose.msra.mxu0 0.0
    %115 = vmatpush.xpose.msra.mxu0 0.0
    %116 = vmatpush.xpose.msra.mxu0 0.0
    %117 = vmatpush.xpose.msra.mxu0 0.0
    %118 = vmatpush.xpose.msra.mxu0 0.0
    %119 = vmatpush.xpose.msra.mxu0 0.0
    %120 = vmatpush.xpose.msra.mxu0 0.0
    %121 = vmatpush.xpose.msra.mxu0 0.0
    %122 = vmatpush.xpose.msra.mxu0 0.0
    %123 = vmatpush.xpose.msra.mxu0 0.0
    %124 = vmatpush.xpose.msra.mxu0 0.0
    %125 = vmatpush.xpose.msra.mxu0 0.0
    %126 = vmatpush.xpose.msra.mxu0 %v57
    %127 = vmatmul.f32.gmra.mxu0 %v109
    %v128 = vpop.f32.mrf.mxu0
    %v129 = vadd.f32 0.0, %v128
    %130 = vdwg.mxu0
    %vm131 = vcmask 64512
    %v132 = vsel %vm131, %v129, -inf
    %133 = vmax.xlane.f32.xlu0 %v132
    %v134 = vpop.xlane.xlu0 %133
    %v135 = vsub.f32 %v129, %v134
    %v136 = vmul.f32 %v135, 1.442695
    %v137 = vpow.pop %v136
    %v138 = vsel %vm131, %v137, 0.0
    %139 = vadd.xlane.f32.xlu0 %v138
    %v140 = vpop.xlane.xlu0 %139
    %v141 = vrcp.pop %v140
    %v142 = vmul.f32 %v140, %v141
    %v143 = vsub.f32 1.0, %v142
    %v144 = vmul.f32 %v141, %v143
    %v145 = vadd.f32 %v141, %v144
    %vm146 = vweird.f32 %v140
    %vm147 = vweird.f32 %v141
    %vm148 = vmor %vm146, %vm147
    %v149 = vsel %vm148, %v141, %v145
    %v150 = vand.u32 2147483647, %v140
    %vm151 = vcmp.eq.f32.partialorder %v150, 8.507059e+37
    %v152 = vand.u32 %v140, 2147483648
    %v153 = vor.u32 1.1754944e-38, %v152
    %v154 = vsel %vm151, %v153, %v149
    %v155 = vmul.f32 %v137, %v154
    %156 = vrot.lane.b32.xlu0 %v80, 96
    %v157 = vpop.permute.xlu0 %156
    %v158 = vsel %vm55, %v157, 0
    %160 = vmatpush.xpose.msra.mxu0 0.0
    %161 = vmatpush.xpose.msra.mxu0 0.0
    %162 = vmatpush.xpose.msra.mxu0 0.0
    %163 = vmatpush.xpose.msra.mxu0 0.0
    %164 = vmatpush.xpose.msra.mxu0 0.0
    %165 = vmatpush.xpose.msra.mxu0 0.0
    %166 = vmatpush.xpose.msra.mxu0 0.0
    %167 = vmatpush.xpose.msra.mxu0 0.0
    %168 = vmatpush.xpose.msra.mxu0 0.0
    %169 = vmatpush.xpose.msra.mxu0 0.0
    %170 = vmatpush.xpose.msra.mxu0 0.0
    %171 = vmatpush.xpose.msra.mxu0 0.0
    %172 = vmatpush.xpose.msra.mxu0 0.0
    %173 = vmatpush.xpose.msra.mxu0 0.0
    %174 = vmatpush.xpose.msra.mxu0 0.0
    %175 = vmatpush.xpose.msra.mxu0 %v57
    %176 = vmatmul.f32.gmra.mxu0 %v158
    %v177 = vpop.f32.mrf.mxu0
    %v178 = vadd.f32 0.0, %v177
    %179 = vdwg.mxu0
    %v180 = vsel %vm131, %v178, -inf
    %181 = vmax.xlane.f32.xlu0 %v180
    %v182 = vpop.xlane.xlu0 %181
    %v183 = vsub.f32 %v178, %v182
    %v184 = vmul.f32 %v183, 1.442695
    %v185 = vpow.pop %v184
    %v186 = vsel %vm131, %v185, 0.0
    %187 = vadd.xlane.f32.xlu0 %v186
    %v188 = vpop.xlane.xlu0 %187
    %v189 = vrcp.pop %v188
    %v190 = vmul.f32 %v188, %v189
    %v191 = vsub.f32 1.0, %v190
    %v192 = vmul.f32 %v189, %v191
    %v193 = vadd.f32 %v189, %v192
    %vm194 = vweird.f32 %v188
    %vm195 = vweird.f32 %v189
    %vm196 = vmor %vm194, %vm195
    %v197 = vsel %vm196, %v189, %v193
    %v198 = vand.u32 2147483647, %v188
    %vm199 = vcmp.eq.f32.partialorder %v198, 8.507059e+37
    %v200 = vand.u32 %v188, 2147483648
    %v201 = vor.u32 1.1754944e-38, %v200
    %v202 = vsel %vm199, %v201, %v197
    %v203 = vmul.f32 %v185, %v202
    %205 = vrot.lane.b32.xlu0 %v103, 96
    %v206 = vpop.permute.xlu0 %205
    %v209 = vsel %vm131, %v203, 0
    %211 = vmatpush.msra.mxu0 0.0
    %212 = vmatpush.msra.mxu0 0.0
    %213 = vmatpush.msra.mxu0 0.0
    %214 = vmatpush.msra.mxu0 0.0
    %215 = vmatpush.msra.mxu0 0.0
    %216 = vmatpush.msra.mxu0 0.0
    %217 = vmatpush.msra.mxu0 0.0
    %218 = vmatpush.msra.mxu0 0.0
    %219 = vmatpush.msra.mxu0 0.0
    %220 = vmatpush.msra.mxu0 0.0
    %221 = vmatpush.msra.mxu0 0.0
    %222 = vmatpush.msra.mxu0 0.0
    %223 = vmatpush.msra.mxu0 0.0
    %224 = vmatpush.msra.mxu0 0.0
    %225 = vmatpush.msra.mxu0 0.0
    %226 = vmatpush.msra.mxu0 %v206
    %227 = vmatmul.f32.gmra.mxu0 %v209
    %v228 = vpop.f32.mrf.mxu0
    %v229 = vadd.f32 0.0, %v228
    %230 = vdwg.mxu0
    %v232 = vsel %vm131, %v155, 0
    %234 = vmatpush.msra.mxu0 0.0
    %235 = vmatpush.msra.mxu0 0.0
    %236 = vmatpush.msra.mxu0 0.0
    %237 = vmatpush.msra.mxu0 0.0
    %238 = vmatpush.msra.mxu0 0.0
    %239 = vmatpush.msra.mxu0 0.0
    %240 = vmatpush.msra.mxu0 0.0
    %241 = vmatpush.msra.mxu0 0.0
    %242 = vmatpush.msra.mxu0 0.0
    %243 = vmatpush.msra.mxu0 0.0
    %244 = vmatpush.msra.mxu0 0.0
    %245 = vmatpush.msra.mxu0 0.0
    %246 = vmatpush.msra.mxu0 0.0
    %247 = vmatpush.msra.mxu0 0.0
    %248 = vmatpush.msra.mxu0 0.0
    %249 = vmatpush.msra.mxu0 %v103
    %250 = vmatmul.f32.gmra.mxu0 %v232
    %v251 = vpop.f32.mrf.mxu0
    %v252 = vadd.f32 %v229, %v251
    %253 = vdwg.mxu0
    %254 = vrot.lane.b32.xlu0 %v80, 64
    %v255 = vpop.permute.xlu0 %254
    %v256 = vsel %vm55, %v255, 0
    %258 = vmatpush.xpose.msra.mxu0 0.0
    %259 = vmatpush.xpose.msra.mxu0 0.0
    %260 = vmatpush.xpose.msra.mxu0 0.0
    %261 = vmatpush.xpose.msra.mxu0 0.0
    %262 = vmatpush.xpose.msra.mxu0 0.0
    %263 = vmatpush.xpose.msra.mxu0 0.0
    %264 = vmatpush.xpose.msra.mxu0 0.0
    %265 = vmatpush.xpose.msra.mxu0 0.0
    %266 = vmatpush.xpose.msra.mxu0 0.0
    %267 = vmatpush.xpose.msra.mxu0 0.0
    %268 = vmatpush.xpose.msra.mxu0 0.0
    %269 = vmatpush.xpose.msra.mxu0 0.0
    %270 = vmatpush.xpose.msra.mxu0 0.0
    %271 = vmatpush.xpose.msra.mxu0 0.0
    %272 = vmatpush.xpose.msra.mxu0 0.0
    %273 = vmatpush.xpose.msra.mxu0 %v57
    %274 = vmatmul.f32.gmra.mxu0 %v256
    %v275 = vpop.f32.mrf.mxu0
    %v276 = vadd.f32 0.0, %v275
    %277 = vdwg.mxu0
    %v278 = vsel %vm131, %v276, -inf
    %279 = vmax.xlane.f32.xlu0 %v278
    %v280 = vpop.xlane.xlu0 %279
    %v281 = vsub.f32 %v276, %v280
    %v282 = vmul.f32 %v281, 1.442695
    %v283 = vpow.pop %v282
    %v284 = vsel %vm131, %v283, 0.0
    %285 = vadd.xlane.f32.xlu0 %v284
    %v286 = vpop.xlane.xlu0 %285
    %v287 = vrcp.pop %v286
    %v288 = vmul.f32 %v286, %v287
    %v289 = vsub.f32 1.0, %v288
    %v290 = vmul.f32 %v287, %v289
    %v291 = vadd.f32 %v287, %v290
    %vm292 = vweird.f32 %v286
    %vm293 = vweird.f32 %v287
    %vm294 = vmor %vm292, %vm293
    %v295 = vsel %vm294, %v287, %v291
    %v296 = vand.u32 2147483647, %v286
    %vm297 = vcmp.eq.f32.partialorder %v296, 8.507059e+37
    %v298 = vand.u32 %v286, 2147483648
    %v299 = vor.u32 1.1754944e-38, %v298
    %v300 = vsel %vm297, %v299, %v295
    %v301 = vmul.f32 %v283, %v300
    %302 = vrot.lane.b32.xlu0 %v103, 64
    %v303 = vpop.permute.xlu0 %302
    %v306 = vsel %vm131, %v301, 0
    %308 = vmatpush.msra.mxu0 0.0
    %309 = vmatpush.msra.mxu0 0.0
    %310 = vmatpush.msra.mxu0 0.0
    %311 = vmatpush.msra.mxu0 0.0
    %312 = vmatpush.msra.mxu0 0.0
    %313 = vmatpush.msra.mxu0 0.0
    %314 = vmatpush.msra.mxu0 0.0
    %315 = vmatpush.msra.mxu0 0.0
    %316 = vmatpush.msra.mxu0 0.0
    %317 = vmatpush.msra.mxu0 0.0
    %318 = vmatpush.msra.mxu0 0.0
    %319 = vmatpush.msra.mxu0 0.0
    %320 = vmatpush.msra.mxu0 0.0
    %321 = vmatpush.msra.mxu0 0.0
    %322 = vmatpush.msra.mxu0 0.0
    %323 = vmatpush.msra.mxu0 %v303
    %324 = vmatmul.f32.gmra.mxu0 %v306
    %v325 = vpop.f32.mrf.mxu0
    %v326 = vadd.f32 0.0, %v325
    %327 = vdwg.mxu0
    %v328 = vadd.f32 %v252, %v326
    %329 = vrot.lane.b32.xlu0 %v80, 32
    %v330 = vpop.permute.xlu0 %329
    %v331 = vsel %vm55, %v330, 0
    %333 = vmatpush.xpose.msra.mxu0 0.0
    %334 = vmatpush.xpose.msra.mxu0 0.0
    %335 = vmatpush.xpose.msra.mxu0 0.0
    %336 = vmatpush.xpose.msra.mxu0 0.0
    %337 = vmatpush.xpose.msra.mxu0 0.0
    %338 = vmatpush.xpose.msra.mxu0 0.0
    %339 = vmatpush.xpose.msra.mxu0 0.0
    %340 = vmatpush.xpose.msra.mxu0 0.0
    %341 = vmatpush.xpose.msra.mxu0 0.0
    %342 = vmatpush.xpose.msra.mxu0 0.0
    %343 = vmatpush.xpose.msra.mxu0 0.0
    %344 = vmatpush.xpose.msra.mxu0 0.0
    %345 = vmatpush.xpose.msra.mxu0 0.0
    %346 = vmatpush.xpose.msra.mxu0 0.0
    %347 = vmatpush.xpose.msra.mxu0 0.0
    %348 = vmatpush.xpose.msra.mxu0 %v57
    %349 = vmatmul.f32.gmra.mxu0 %v331
    %v350 = vpop.f32.mrf.mxu0
    %v351 = vadd.f32 0.0, %v350
    %352 = vdwg.mxu0
    %v353 = vsel %vm131, %v351, -inf
    %354 = vmax.xlane.f32.xlu0 %v353
    %v355 = vpop.xlane.xlu0 %354
    %v356 = vsub.f32 %v351, %v355
    %v357 = vmul.f32 %v356, 1.442695
    %v358 = vpow.pop %v357
    %v359 = vsel %vm131, %v358, 0.0
    %360 = vadd.xlane.f32.xlu0 %v359
    %v361 = vpop.xlane.xlu0 %360
    %v362 = vrcp.pop %v361
    %v363 = vmul.f32 %v361, %v362
    %v364 = vsub.f32 1.0, %v363
    %v365 = vmul.f32 %v362, %v364
    %v366 = vadd.f32 %v362, %v365
    %vm367 = vweird.f32 %v361
    %vm368 = vweird.f32 %v362
    %vm369 = vmor %vm367, %vm368
    %v370 = vsel %vm369, %v362, %v366
    %v371 = vand.u32 2147483647, %v361
    %vm372 = vcmp.eq.f32.partialorder %v371, 8.507059e+37
    %v373 = vand.u32 %v361, 2147483648
    %v374 = vor.u32 1.1754944e-38, %v373
    %v375 = vsel %vm372, %v374, %v370
    %v376 = vmul.f32 %v358, %v375
    %377 = vrot.lane.b32.xlu0 %v103, 32
    %v378 = vpop.permute.xlu0 %377
    %v381 = vsel %vm131, %v376, 0
    %383 = vmatpush.msra.mxu0 0.0
    %384 = vmatpush.msra.mxu0 0.0
    %385 = vmatpush.msra.mxu0 0.0
    %386 = vmatpush.msra.mxu0 0.0
    %387 = vmatpush.msra.mxu0 0.0
    %388 = vmatpush.msra.mxu0 0.0
    %389 = vmatpush.msra.mxu0 0.0
    %390 = vmatpush.msra.mxu0 0.0
    %391 = vmatpush.msra.mxu0 0.0
    %392 = vmatpush.msra.mxu0 0.0
    %393 = vmatpush.msra.mxu0 0.0
    %394 = vmatpush.msra.mxu0 0.0
    %395 = vmatpush.msra.mxu0 0.0
    %396 = vmatpush.msra.mxu0 0.0
    %397 = vmatpush.msra.mxu0 0.0
    %398 = vmatpush.msra.mxu0 %v378
    %399 = vmatmul.f32.gmra.mxu0 %v381
    %v400 = vpop.f32.mrf.mxu0
    %v401 = vadd.f32 0.0, %v400
    %402 = vdwg.mxu0
    %v403 = vadd.f32 %v328, %v401
    %v405 = vsel %vm55, %v83, 0
    %407 = vmatpush.xpose.msra.mxu0 0.0
    %408 = vmatpush.xpose.msra.mxu0 0.0
    %409 = vmatpush.xpose.msra.mxu0 0.0
    %410 = vmatpush.xpose.msra.mxu0 0.0
    %411 = vmatpush.xpose.msra.mxu0 0.0
    %412 = vmatpush.xpose.msra.mxu0 0.0
    %413 = vmatpush.xpose.msra.mxu0 0.0
    %414 = vmatpush.xpose.msra.mxu0 0.0
    %415 = vmatpush.xpose.msra.mxu0 0.0
    %416 = vmatpush.xpose.msra.mxu0 0.0
    %417 = vmatpush.xpose.msra.mxu0 0.0
    %418 = vmatpush.xpose.msra.mxu0 0.0
    %419 = vmatpush.xpose.msra.mxu0 0.0
    %420 = vmatpush.xpose.msra.mxu0 0.0
    %421 = vmatpush.xpose.msra.mxu0 0.0
    %422 = vmatpush.xpose.msra.mxu0 %v60
    %423 = vmatmul.f32.gmra.mxu0 %v405
    %v424 = vpop.f32.mrf.mxu0
    %v425 = vadd.f32 0.0, %v424
    %426 = vdwg.mxu0
    %v427 = vsel %vm131, %v425, -inf
    %428 = vmax.xlane.f32.xlu0 %v427
    %v429 = vpop.xlane.xlu0 %428
    %v430 = vsub.f32 %v425, %v429
    %v431 = vmul.f32 %v430, 1.442695
    %v432 = vpow.pop %v431
    %v433 = vsel %vm131, %v432, 0.0
    %434 = vadd.xlane.f32.xlu0 %v433
    %v435 = vpop.xlane.xlu0 %434
    %v436 = vrcp.pop %v435
    %v437 = vmul.f32 %v435, %v436
    %v438 = vsub.f32 1.0, %v437
    %v439 = vmul.f32 %v436, %v438
    %v440 = vadd.f32 %v436, %v439
    %vm441 = vweird.f32 %v435
    %vm442 = vweird.f32 %v436
    %vm443 = vmor %vm441, %vm442
    %v444 = vsel %vm443, %v436, %v440
    %v445 = vand.u32 2147483647, %v435
    %vm446 = vcmp.eq.f32.partialorder %v445, 8.507059e+37
    %v447 = vand.u32 %v435, 2147483648
    %v448 = vor.u32 1.1754944e-38, %v447
    %v449 = vsel %vm446, %v448, %v444
    %v450 = vmul.f32 %v432, %v449
    %451 = vrot.lane.b32.xlu0 %v83, 96
    %v452 = vpop.permute.xlu0 %451
    %v453 = vsel %vm55, %v452, 0
    %455 = vmatpush.xpose.msra.mxu0 0.0
    %456 = vmatpush.xpose.msra.mxu0 0.0
    %457 = vmatpush.xpose.msra.mxu0 0.0
    %458 = vmatpush.xpose.msra.mxu0 0.0
    %459 = vmatpush.xpose.msra.mxu0 0.0
    %460 = vmatpush.xpose.msra.mxu0 0.0
    %461 = vmatpush.xpose.msra.mxu0 0.0
    %462 = vmatpush.xpose.msra.mxu0 0.0
    %463 = vmatpush.xpose.msra.mxu0 0.0
    %464 = vmatpush.xpose.msra.mxu0 0.0
    %465 = vmatpush.xpose.msra.mxu0 0.0
    %466 = vmatpush.xpose.msra.mxu0 0.0
    %467 = vmatpush.xpose.msra.mxu0 0.0
    %468 = vmatpush.xpose.msra.mxu0 0.0
    %469 = vmatpush.xpose.msra.mxu0 0.0
    %470 = vmatpush.xpose.msra.mxu0 %v60
    %471 = vmatmul.f32.gmra.mxu0 %v453
    %v472 = vpop.f32.mrf.mxu0
    %v473 = vadd.f32 0.0, %v472
    %474 = vdwg.mxu0
    %v475 = vsel %vm131, %v473, -inf
    %476 = vmax.xlane.f32.xlu0 %v475
    %v477 = vpop.xlane.xlu0 %476
    %v478 = vsub.f32 %v473, %v477
    %v479 = vmul.f32 %v478, 1.442695
    %v480 = vpow.pop %v479
    %v481 = vsel %vm131, %v480, 0.0
    %482 = vadd.xlane.f32.xlu0 %v481
    %v483 = vpop.xlane.xlu0 %482
    %v484 = vrcp.pop %v483
    %v485 = vmul.f32 %v483, %v484
    %v486 = vsub.f32 1.0, %v485
    %v487 = vmul.f32 %v484, %v486
    %v488 = vadd.f32 %v484, %v487
    %vm489 = vweird.f32 %v483
    %vm490 = vweird.f32 %v484
    %vm491 = vmor %vm489, %vm490
    %v492 = vsel %vm491, %v484, %v488
    %v493 = vand.u32 2147483647, %v483
    %vm494 = vcmp.eq.f32.partialorder %v493, 8.507059e+37
    %v495 = vand.u32 %v483, 2147483648
    %v496 = vor.u32 1.1754944e-38, %v495
    %v497 = vsel %vm494, %v496, %v492
    %v498 = vmul.f32 %v480, %v497
    %500 = vrot.lane.b32.xlu0 %v106, 96
    %v501 = vpop.permute.xlu0 %500
    %v504 = vsel %vm131, %v498, 0
    %506 = vmatpush.msra.mxu0 0.0
    %507 = vmatpush.msra.mxu0 0.0
    %508 = vmatpush.msra.mxu0 0.0
    %509 = vmatpush.msra.mxu0 0.0
    %510 = vmatpush.msra.mxu0 0.0
    %511 = vmatpush.msra.mxu0 0.0
    %512 = vmatpush.msra.mxu0 0.0
    %513 = vmatpush.msra.mxu0 0.0
    %514 = vmatpush.msra.mxu0 0.0
    %515 = vmatpush.msra.mxu0 0.0
    %516 = vmatpush.msra.mxu0 0.0
    %517 = vmatpush.msra.mxu0 0.0
    %518 = vmatpush.msra.mxu0 0.0
    %519 = vmatpush.msra.mxu0 0.0
    %520 = vmatpush.msra.mxu0 0.0
    %521 = vmatpush.msra.mxu0 %v501
    %522 = vmatmul.f32.gmra.mxu0 %v504
    %v523 = vpop.f32.mrf.mxu0
    %v524 = vadd.f32 0.0, %v523
    %525 = vdwg.mxu0
    %v527 = vsel %vm131, %v450, 0
    %529 = vmatpush.msra.mxu0 0.0
    %530 = vmatpush.msra.mxu0 0.0
    %531 = vmatpush.msra.mxu0 0.0
    %532 = vmatpush.msra.mxu0 0.0
    %533 = vmatpush.msra.mxu0 0.0
    %534 = vmatpush.msra.mxu0 0.0
    %535 = vmatpush.msra.mxu0 0.0
    %536 = vmatpush.msra.mxu0 0.0
    %537 = vmatpush.msra.mxu0 0.0
    %538 = vmatpush.msra.mxu0 0.0
    %539 = vmatpush.msra.mxu0 0.0
    %540 = vmatpush.msra.mxu0 0.0
    %541 = vmatpush.msra.mxu0 0.0
    %542 = vmatpush.msra.mxu0 0.0
    %543 = vmatpush.msra.mxu0 0.0
    %544 = vmatpush.msra.mxu0 %v106
    %545 = vmatmul.f32.gmra.mxu0 %v527
    %v546 = vpop.f32.mrf.mxu0
    %v547 = vadd.f32 %v524, %v546
    %548 = vdwg.mxu0
    %549 = vrot.lane.b32.xlu0 %v83, 64
    %v550 = vpop.permute.xlu0 %549
    %v551 = vsel %vm55, %v550, 0
    %553 = vmatpush.xpose.msra.mxu0 0.0
    %554 = vmatpush.xpose.msra.mxu0 0.0
    %555 = vmatpush.xpose.msra.mxu0 0.0
    %556 = vmatpush.xpose.msra.mxu0 0.0
    %557 = vmatpush.xpose.msra.mxu0 0.0
    %558 = vmatpush.xpose.msra.mxu0 0.0
    %559 = vmatpush.xpose.msra.mxu0 0.0
    %560 = vmatpush.xpose.msra.mxu0 0.0
    %561 = vmatpush.xpose.msra.mxu0 0.0
    %562 = vmatpush.xpose.msra.mxu0 0.0
    %563 = vmatpush.xpose.msra.mxu0 0.0
    %564 = vmatpush.xpose.msra.mxu0 0.0
    %565 = vmatpush.xpose.msra.mxu0 0.0
    %566 = vmatpush.xpose.msra.mxu0 0.0
    %567 = vmatpush.xpose.msra.mxu0 0.0
    %568 = vmatpush.xpose.msra.mxu0 %v60
    %569 = vmatmul.f32.gmra.mxu0 %v551
    %v570 = vpop.f32.mrf.mxu0
    %v571 = vadd.f32 0.0, %v570
    %572 = vdwg.mxu0
    %v573 = vsel %vm131, %v571, -inf
    %574 = vmax.xlane.f32.xlu0 %v573
    %v575 = vpop.xlane.xlu0 %574
    %v576 = vsub.f32 %v571, %v575
    %v577 = vmul.f32 %v576, 1.442695
    %v578 = vpow.pop %v577
    %v579 = vsel %vm131, %v578, 0.0
    %580 = vadd.xlane.f32.xlu0 %v579
    %v581 = vpop.xlane.xlu0 %580
    %v582 = vrcp.pop %v581
    %v583 = vmul.f32 %v581, %v582
    %v584 = vsub.f32 1.0, %v583
    %v585 = vmul.f32 %v582, %v584
    %v586 = vadd.f32 %v582, %v585
    %vm587 = vweird.f32 %v581
    %vm588 = vweird.f32 %v582
    %vm589 = vmor %vm587, %vm588
    %v590 = vsel %vm589, %v582, %v586
    %v591 = vand.u32 2147483647, %v581
    %vm592 = vcmp.eq.f32.partialorder %v591, 8.507059e+37
    %v593 = vand.u32 %v581, 2147483648
    %v594 = vor.u32 1.1754944e-38, %v593
    %v595 = vsel %vm592, %v594, %v590
    %v596 = vmul.f32 %v578, %v595
    %597 = vrot.lane.b32.xlu0 %v106, 64
    %v598 = vpop.permute.xlu0 %597
    %v601 = vsel %vm131, %v596, 0
    %603 = vmatpush.msra.mxu0 0.0
    %604 = vmatpush.msra.mxu0 0.0
    %605 = vmatpush.msra.mxu0 0.0
    %606 = vmatpush.msra.mxu0 0.0
    %607 = vmatpush.msra.mxu0 0.0
    %608 = vmatpush.msra.mxu0 0.0
    %609 = vmatpush.msra.mxu0 0.0
    %610 = vmatpush.msra.mxu0 0.0
    %611 = vmatpush.msra.mxu0 0.0
    %612 = vmatpush.msra.mxu0 0.0
    %613 = vmatpush.msra.mxu0 0.0
    %614 = vmatpush.msra.mxu0 0.0
    %615 = vmatpush.msra.mxu0 0.0
    %616 = vmatpush.msra.mxu0 0.0
    %617 = vmatpush.msra.mxu0 0.0
    %618 = vmatpush.msra.mxu0 %v598
    %619 = vmatmul.f32.gmra.mxu0 %v601
    %v620 = vpop.f32.mrf.mxu0
    %v621 = vadd.f32 0.0, %v620
    %622 = vdwg.mxu0
    %v623 = vadd.f32 %v547, %v621
    %624 = vrot.lane.b32.xlu0 %v83, 32
    %v625 = vpop.permute.xlu0 %624
    %v626 = vsel %vm55, %v625, 0
    %628 = vmatpush.xpose.msra.mxu0 0.0
    %629 = vmatpush.xpose.msra.mxu0 0.0
    %630 = vmatpush.xpose.msra.mxu0 0.0
    %631 = vmatpush.xpose.msra.mxu0 0.0
    %632 = vmatpush.xpose.msra.mxu0 0.0
    %633 = vmatpush.xpose.msra.mxu0 0.0
    %634 = vmatpush.xpose.msra.mxu0 0.0
    %635 = vmatpush.xpose.msra.mxu0 0.0
    %636 = vmatpush.xpose.msra.mxu0 0.0
    %637 = vmatpush.xpose.msra.mxu0 0.0
    %638 = vmatpush.xpose.msra.mxu0 0.0
    %639 = vmatpush.xpose.msra.mxu0 0.0
    %640 = vmatpush.xpose.msra.mxu0 0.0
    %641 = vmatpush.xpose.msra.mxu0 0.0
    %642 = vmatpush.xpose.msra.mxu0 0.0
    %643 = vmatpush.xpose.msra.mxu0 %v60
    %644 = vmatmul.f32.gmra.mxu0 %v626
    %v645 = vpop.f32.mrf.mxu0
    %v646 = vadd.f32 0.0, %v645
    %647 = vdwg.mxu0
    %v648 = vsel %vm131, %v646, -inf
    %649 = vmax.xlane.f32.xlu0 %v648
    %v650 = vpop.xlane.xlu0 %649
    %v651 = vsub.f32 %v646, %v650
    %v652 = vmul.f32 %v651, 1.442695
    %v653 = vpow.pop %v652
    %v654 = vsel %vm131, %v653, 0.0
    %655 = vadd.xlane.f32.xlu0 %v654
    %v656 = vpop.xlane.xlu0 %655
    %v657 = vrcp.pop %v656
    %v658 = vmul.f32 %v656, %v657
    %v659 = vsub.f32 1.0, %v658
    %v660 = vmul.f32 %v657, %v659
    %v661 = vadd.f32 %v657, %v660
    %vm662 = vweird.f32 %v656
    %vm663 = vweird.f32 %v657
    %vm664 = vmor %vm662, %vm663
    %v665 = vsel %vm664, %v657, %v661
    %v666 = vand.u32 2147483647, %v656
    %vm667 = vcmp.eq.f32.partialorder %v666, 8.507059e+37
    %v668 = vand.u32 %v656, 2147483648
    %v669 = vor.u32 1.1754944e-38, %v668
    %v670 = vsel %vm667, %v669, %v665
    %v671 = vmul.f32 %v653, %v670
    %672 = vrot.lane.b32.xlu0 %v106, 32
    %v673 = vpop.permute.xlu0 %672
    %v676 = vsel %vm131, %v671, 0
    %678 = vmatpush.msra.mxu0 0.0
    %679 = vmatpush.msra.mxu0 0.0
    %680 = vmatpush.msra.mxu0 0.0
    %681 = vmatpush.msra.mxu0 0.0
    %682 = vmatpush.msra.mxu0 0.0
    %683 = vmatpush.msra.mxu0 0.0
    %684 = vmatpush.msra.mxu0 0.0
    %685 = vmatpush.msra.mxu0 0.0
    %686 = vmatpush.msra.mxu0 0.0
    %687 = vmatpush.msra.mxu0 0.0
    %688 = vmatpush.msra.mxu0 0.0
    %689 = vmatpush.msra.mxu0 0.0
    %690 = vmatpush.msra.mxu0 0.0
    %691 = vmatpush.msra.mxu0 0.0
    %692 = vmatpush.msra.mxu0 0.0
    %693 = vmatpush.msra.mxu0 %v673
    %694 = vmatmul.f32.gmra.mxu0 %v676
    %v695 = vpop.f32.mrf.mxu0
    %v696 = vadd.f32 0.0, %v695
    %697 = vdwg.mxu0
    %v698 = vadd.f32 %v623, %v696
    %v699 = vadd.f32 %v403, %v45
    %v700 = vadd.f32 %v698, %v46
    %v701 = vadd.f32 %v45, %v699
    %v702 = vadd.f32 %v46, %v700
    %v703 = vsel %vm55, %v701, 0.0
    %704 = vadd.xlane.f32.xlu0 %v703
    %v705 = vpop.xlane.xlu0 %704
    %v706 = vsel %vm55, %v702, 0.0
    %707 = vadd.xlane.f32.xlu0 %v706
    %v708 = vpop.xlane.xlu0 %707
    %v709 = vrcp.pop 32.0
    %v710 = vmul.f32 32.0, %v709
    %v711 = vsub.f32 1.0, %v710
    %v712 = vmul.f32 %v709, %v711
    %v713 = vadd.f32 %v709, %v712
    %vm714 = vweird.f32 %v709
    %v715 = vsel %vm714, %v709, %v713
    %v716 = vmul.f32 %v705, %v715
    %v717 = vmul.f32 %v708, %v715
    %v718 = vsub.f32 %v701, %v716
    %v719 = vsub.f32 %v702, %v717
    %v720 = vmul.f32 %v718, %v718
    %v721 = vmul.f32 %v719, %v719
    %v722 = vsel %vm55, %v720, 0.0
    %723 = vadd.xlane.f32.xlu0 %v722
    %v724 = vpop.xlane.xlu0 %723
    %v725 = vsel %vm55, %v721, 0.0
    %726 = vadd.xlane.f32.xlu0 %v725
    %v727 = vpop.xlane.xlu0 %726
    %v728 = vmul.f32 %v724, %v715
    %v729 = vmul.f32 %v727, %v715
    %v730 = vadd.f32 %v728, 1e-05
    %v731 = vadd.f32 %v729, 1e-05
    %v732 = vrsqrt.pop %v730
    %v733 = vmul.f32 %v732, %v730
    %v734 = vmul.f32 %v733, %v732
    %v735 = vmul.f32 0.5, %v734
    %v736 = vsub.f32 1.5, %v735
    %v737 = vmul.f32 %v732, %v736
    %vm738 = vweird.f32 %v730
    %vm739 = vweird.f32 %v732
    %vm740 = vmor %vm738, %vm739
    %v741 = vsel %vm740, %v732, %v737
    %v742 = vrsqrt.pop %v731
    %v743 = vmul.f32 %v742, %v731
    %v744 = vmul.f32 %v743, %v742
    %v745 = vmul.f32 0.5, %v744
    %v746 = vsub.f32 1.5, %v745
    %v747 = vmul.f32 %v742, %v746
    %vm748 = vweird.f32 %v731
    %vm749 = vweird.f32 %v742
    %vm750 = vmor %vm748, %vm749
    %v751 = vsel %vm750, %v742, %v747
    %v752 = vmul.f32 %v718, %v741
    %v753 = vmul.f32 %v719, %v751
    %v754 = vperm.slane %v37, 2
    %v755 = vmul.f32 %v752, %v754
    %v756 = vmul.f32 %v753, %v754
    %v757 = vperm.slane %v37, 3
    %v758 = vadd.f32 %v755, %v757
    %v759 = vadd.f32 %v756, %v757
    %v760 = vadd.f32 %v758, %v38
    %v761 = vadd.f32 %v759, %v39
    %v762 = vld [vmem:[%s1] sm:$0xff]
    %v763 = vld [vmem:[%s1 + $0x8] sm:$0xff]
    %v764 = vld [vmem:[%s1 + $0x10] sm:$0xff]
    %v765 = vadd.f32 %v762, %v40
    %v766 = vadd.f32 %v763, %v41
    %v767 = vadd.f32 %v764, %v42
    %v768 = vld [vmem:[#allocation2 + $0x10] sm:$0xff]
    %v769 = vld [vmem:[#allocation2 + $0x40] sm:$0xff]
    %v770 = vld [vmem:[#allocation2 + $0x70] sm:$0xff]
    %v771 = vld [vmem:[#allocation2 + $0xa0] sm:$0xff]
    %v773 = vsel %vm55, %v760, 0
    %v776 = vsel %vm55, %v761, 0
    %778 = vmatpush.msra.mxu0 0.0
    %779 = vmatpush.msra.mxu0 0.0
    %780 = vmatpush.msra.mxu0 0.0
    %781 = vmatpush.msra.mxu0 0.0
    %782 = vmatpush.msra.mxu0 0.0
    %783 = vmatpush.msra.mxu0 0.0
    %784 = vmatpush.msra.mxu0 0.0
    %785 = vmatpush.msra.mxu0 0.0
    %786 = vmatpush.msra.mxu0 0.0
    %787 = vmatpush.msra.mxu0 0.0
    %788 = vmatpush.msra.mxu0 0.0
    %789 = vmatpush.msra.mxu0 0.0
    %790 = vmatpush.msra.mxu0 %v771
    %791 = vmatpush.msra.mxu0 %v770
    %792 = vmatpush.msra.mxu0 %v769
    %793 = vmatpush.msra.mxu0 %v768
    %794 = vmatmul.f32.gmra.mxu0 %v773
    %v795 = vpop.f32.mrf.mxu0
    %v796 = vadd.f32 0.0, %v795
    %797 = vmatmul.f32.gmra.mxu0 %v776
    %v798 = vpop.f32.mrf.mxu0
    %v799 = vadd.f32 0.0, %v798
    %800 = vdwg.mxu0
    %v801 = vld [vmem:[#allocation2 + $0x18] sm:$0xff]
    %v802 = vld [vmem:[#allocation2 + $0x48] sm:$0xff]
    %v803 = vld [vmem:[#allocation2 + $0x78] sm:$0xff]
    %v804 = vld [vmem:[#allocation2 + $0xa8] sm:$0xff]
    %v806 = vsel %vm55, %v765, 0
    %v809 = vsel %vm55, %v766, 0
    %v812 = vsel %vm55, %v767, 0
    %814 = vmatpush.msra.mxu0 0.0
    %815 = vmatpush.msra.mxu0 0.0
    %816 = vmatpush.msra.mxu0 0.0
    %817 = vmatpush.msra.mxu0 0.0
    %818 = vmatpush.msra.mxu0 0.0
    %819 = vmatpush.msra.mxu0 0.0
    %820 = vmatpush.msra.mxu0 0.0
    %821 = vmatpush.msra.mxu0 0.0
    %822 = vmatpush.msra.mxu0 0.0
    %823 = vmatpush.msra.mxu0 0.0
    %824 = vmatpush.msra.mxu0 0.0
    %825 = vmatpush.msra.mxu0 0.0
    %826 = vmatpush.msra.mxu0 %v804
    %827 = vmatpush.msra.mxu0 %v803
    %828 = vmatpush.msra.mxu0 %v802
    %829 = vmatpush.msra.mxu0 %v801
    %830 = vmatmul.f32.gmra.mxu0 %v806
    %v831 = vpop.f32.mrf.mxu0
    %v832 = vadd.f32 0.0, %v831
    %833 = vmatmul.f32.gmra.mxu0 %v809
    %v834 = vpop.f32.mrf.mxu0
    %v835 = vadd.f32 0.0, %v834
    %836 = vmatmul.f32.gmra.mxu0 %v812
    %v837 = vpop.f32.mrf.mxu0
    %v838 = vadd.f32 0.0, %v837
    %839 = vdwg.mxu0
    %v841 = vsel %vm55, %v796, 0
    %843 = vmatpush.xpose.msra.mxu0 0.0
    %844 = vmatpush.xpose.msra.mxu0 0.0
    %845 = vmatpush.xpose.msra.mxu0 0.0
    %846 = vmatpush.xpose.msra.mxu0 0.0
    %847 = vmatpush.xpose.msra.mxu0 0.0
    %848 = vmatpush.xpose.msra.mxu0 0.0
    %849 = vmatpush.xpose.msra.mxu0 0.0
    %850 = vmatpush.xpose.msra.mxu0 0.0
    %851 = vmatpush.xpose.msra.mxu0 0.0
    %852 = vmatpush.xpose.msra.mxu0 0.0
    %853 = vmatpush.xpose.msra.mxu0 0.0
    %854 = vmatpush.xpose.msra.mxu0 0.0
    %855 = vmatpush.xpose.msra.mxu0 0.0
    %856 = vmatpush.xpose.msra.mxu0 0.0
    %857 = vmatpush.xpose.msra.mxu0 %v809
    %858 = vmatpush.xpose.msra.mxu0 %v806
    %859 = vmatmul.f32.gmra.mxu0 %v841
    %v860 = vpop.f32.mrf.mxu0
    %v861 = vadd.f32 0.0, %v860
    %862 = vdwg.mxu0
    %vm863 = vcmask 97280
    %v864 = vsel %vm863, %v861, -inf
    %865 = vmax.xlane.f32.xlu0 %v864
    %v866 = vpop.xlane.xlu0 %865
    %v867 = vsub.f32 %v861, %v866
    %v868 = vmul.f32 %v867, 1.442695
    %v869 = vpow.pop %v868
    %v870 = vsel %vm863, %v869, 0.0
    %871 = vadd.xlane.f32.xlu0 %v870
    %v872 = vpop.xlane.xlu0 %871
    %v873 = vrcp.pop %v872
    %v874 = vmul.f32 %v872, %v873
    %v875 = vsub.f32 1.0, %v874
    %v876 = vmul.f32 %v873, %v875
    %v877 = vadd.f32 %v873, %v876
    %vm878 = vweird.f32 %v872
    %vm879 = vweird.f32 %v873
    %vm880 = vmor %vm878, %vm879
    %v881 = vsel %vm880, %v873, %v877
    %v882 = vand.u32 2147483647, %v872
    %vm883 = vcmp.eq.f32.partialorder %v882, 8.507059e+37
    %v884 = vand.u32 %v872, 2147483648
    %v885 = vor.u32 1.1754944e-38, %v884
    %v886 = vsel %vm883, %v885, %v881
    %v887 = vmul.f32 %v869, %v886
    %888 = vrot.lane.b32.xlu0 %v796, 96
    %v889 = vpop.permute.xlu0 %888
    %v890 = vsel %vm55, %v889, 0
    %892 = vmatpush.xpose.msra.mxu0 0.0
    %893 = vmatpush.xpose.msra.mxu0 0.0
    %894 = vmatpush.xpose.msra.mxu0 0.0
    %895 = vmatpush.xpose.msra.mxu0 0.0
    %896 = vmatpush.xpose.msra.mxu0 0.0
    %897 = vmatpush.xpose.msra.mxu0 0.0
    %898 = vmatpush.xpose.msra.mxu0 0.0
    %899 = vmatpush.xpose.msra.mxu0 0.0
    %900 = vmatpush.xpose.msra.mxu0 0.0
    %901 = vmatpush.xpose.msra.mxu0 0.0
    %902 = vmatpush.xpose.msra.mxu0 0.0
    %903 = vmatpush.xpose.msra.mxu0 0.0
    %904 = vmatpush.xpose.msra.mxu0 0.0
    %905 = vmatpush.xpose.msra.mxu0 0.0
    %906 = vmatpush.xpose.msra.mxu0 %v809
    %907 = vmatpush.xpose.msra.mxu0 %v806
    %908 = vmatmul.f32.gmra.mxu0 %v890
    %v909 = vpop.f32.mrf.mxu0
    %v910 = vadd.f32 0.0, %v909
    %911 = vdwg.mxu0
    %v912 = vsel %vm863, %v910, -inf
    %913 = vmax.xlane.f32.xlu0 %v912
    %v914 = vpop.xlane.xlu0 %913
    %v915 = vsub.f32 %v910, %v914
    %v916 = vmul.f32 %v915, 1.442695
    %v917 = vpow.pop %v916
    %v918 = vsel %vm863, %v917, 0.0
    %919 = vadd.xlane.f32.xlu0 %v918
    %v920 = vpop.xlane.xlu0 %919
    %v921 = vrcp.pop %v920
    %v922 = vmul.f32 %v920, %v921
    %v923 = vsub.f32 1.0, %v922
    %v924 = vmul.f32 %v921, %v923
    %v925 = vadd.f32 %v921, %v924
    %vm926 = vweird.f32 %v920
    %vm927 = vweird.f32 %v921
    %vm928 = vmor %vm926, %vm927
    %v929 = vsel %vm928, %v921, %v925
    %v930 = vand.u32 2147483647, %v920
    %vm931 = vcmp.eq.f32.partialorder %v930, 8.507059e+37
    %v932 = vand.u32 %v920, 2147483648
    %v933 = vor.u32 1.1754944e-38, %v932
    %v934 = vsel %vm931, %v933, %v929
    %v935 = vmul.f32 %v917, %v934
    %938 = vrot.lane.b32.xlu0 %v832, 96
    %v939 = vpop.permute.xlu0 %938
    %940 = vrot.lane.b32.xlu0 %v835, 96
    %v941 = vpop.permute.xlu0 %940
    %v944 = vsel %vm863, %v935, 0
    %vm946 = vcmask 1043456
    %v947 = vsel %vm946, %v941, 0
    %949 = vmatpush.msra.mxu0 0.0
    %950 = vmatpush.msra.mxu0 0.0
    %951 = vmatpush.msra.mxu0 0.0
    %952 = vmatpush.msra.mxu0 0.0
    %953 = vmatpush.msra.mxu0 0.0
    %954 = vmatpush.msra.mxu0 0.0
    %955 = vmatpush.msra.mxu0 0.0
    %956 = vmatpush.msra.mxu0 0.0
    %957 = vmatpush.msra.mxu0 0.0
    %958 = vmatpush.msra.mxu0 0.0
    %959 = vmatpush.msra.mxu0 0.0
    %960 = vmatpush.msra.mxu0 0.0
    %961 = vmatpush.msra.mxu0 0.0
    %962 = vmatpush.msra.mxu0 0.0
    %963 = vmatpush.msra.mxu0 %v947
    %964 = vmatpush.msra.mxu0 %v939
    %965 = vmatmul.f32.gmra.mxu0 %v944
    %v966 = vpop.f32.mrf.mxu0
    %v967 = vadd.f32 0.0, %v966
    %968 = vdwg.mxu0
    %v970 = vsel %vm863, %v887, 0
    %v972 = vsel %vm946, %v835, 0
    %974 = vmatpush.msra.mxu0 0.0
    %975 = vmatpush.msra.mxu0 0.0
    %976 = vmatpush.msra.mxu0 0.0
    %977 = vmatpush.msra.mxu0 0.0
    %978 = vmatpush.msra.mxu0 0.0
    %979 = vmatpush.msra.mxu0 0.0
    %980 = vmatpush.msra.mxu0 0.0
    %981 = vmatpush.msra.mxu0 0.0
    %982 = vmatpush.msra.mxu0 0.0
    %983 = vmatpush.msra.mxu0 0.0
    %984 = vmatpush.msra.mxu0 0.0
    %985 = vmatpush.msra.mxu0 0.0
    %986 = vmatpush.msra.mxu0 0.0
    %987 = vmatpush.msra.mxu0 0.0
    %988 = vmatpush.msra.mxu0 %v972
    %989 = vmatpush.msra.mxu0 %v832
    %990 = vmatmul.f32.gmra.mxu0 %v970
    %v991 = vpop.f32.mrf.mxu0
    %v992 = vadd.f32 %v967, %v991
    %993 = vdwg.mxu0
    %994 = vrot.lane.b32.xlu0 %v796, 64
    %v995 = vpop.permute.xlu0 %994
    %v996 = vsel %vm55, %v995, 0
    %998 = vmatpush.xpose.msra.mxu0 0.0
    %999 = vmatpush.xpose.msra.mxu0 0.0
    %1000 = vmatpush.xpose.msra.mxu0 0.0
    %1001 = vmatpush.xpose.msra.mxu0 0.0
    %1002 = vmatpush.xpose.msra.mxu0 0.0
    %1003 = vmatpush.xpose.msra.mxu0 0.0
    %1004 = vmatpush.xpose.msra.mxu0 0.0
    %1005 = vmatpush.xpose.msra.mxu0 0.0
    %1006 = vmatpush.xpose.msra.mxu0 0.0
    %1007 = vmatpush.xpose.msra.mxu0 0.0
    %1008 = vmatpush.xpose.msra.mxu0 0.0
    %1009 = vmatpush.xpose.msra.mxu0 0.0
    %1010 = vmatpush.xpose.msra.mxu0 0.0
    %1011 = vmatpush.xpose.msra.mxu0 0.0
    %1012 = vmatpush.xpose.msra.mxu0 %v809
    %1013 = vmatpush.xpose.msra.mxu0 %v806
    %1014 = vmatmul.f32.gmra.mxu0 %v996
    %v1015 = vpop.f32.mrf.mxu0
    %v1016 = vadd.f32 0.0, %v1015
    %1017 = vdwg.mxu0
    %v1018 = vsel %vm863, %v1016, -inf
    %1019 = vmax.xlane.f32.xlu0 %v1018
    %v1020 = vpop.xlane.xlu0 %1019
    %v1021 = vsub.f32 %v1016, %v1020
    %v1022 = vmul.f32 %v1021, 1.442695
    %v1023 = vpow.pop %v1022
    %v1024 = vsel %vm863, %v1023, 0.0
    %1025 = vadd.xlane.f32.xlu0 %v1024
    %v1026 = vpop.xlane.xlu0 %1025
    %v1027 = vrcp.pop %v1026
    %v1028 = vmul.f32 %v1026, %v1027
    %v1029 = vsub.f32 1.0, %v1028
    %v1030 = vmul.f32 %v1027, %v1029
    %v1031 = vadd.f32 %v1027, %v1030
    %vm1032 = vweird.f32 %v1026
    %vm1033 = vweird.f32 %v1027
    %vm1034 = vmor %vm1032, %vm1033
    %v1035 = vsel %vm1034, %v1027, %v1031
    %v1036 = vand.u32 2147483647, %v1026
    %vm1037 = vcmp.eq.f32.partialorder %v1036, 8.507059e+37
    %v1038 = vand.u32 %v1026, 2147483648
    %v1039 = vor.u32 1.1754944e-38, %v1038
    %v1040 = vsel %vm1037, %v1039, %v1035
    %v1041 = vmul.f32 %v1023, %v1040
    %1042 = vrot.lane.b32.xlu0 %v832, 64
    %v1043 = vpop.permute.xlu0 %1042
    %1044 = vrot.lane.b32.xlu0 %v835, 64
    %v1045 = vpop.permute.xlu0 %1044
    %v1048 = vsel %vm863, %v1041, 0
    %v1050 = vsel %vm946, %v1045, 0
    %1052 = vmatpush.msra.mxu0 0.0
    %1053 = vmatpush.msra.mxu0 0.0
    %1054 = vmatpush.msra.mxu0 0.0
    %1055 = vmatpush.msra.mxu0 0.0
    %1056 = vmatpush.msra.mxu0 0.0
    %1057 = vmatpush.msra.mxu0 0.0
    %1058 = vmatpush.msra.mxu0 0.0
    %1059 = vmatpush.msra.mxu0 0.0
    %1060 = vmatpush.msra.mxu0 0.0
    %1061 = vmatpush.msra.mxu0 0.0
    %1062 = vmatpush.msra.mxu0 0.0
    %1063 = vmatpush.msra.mxu0 0.0
    %1064 = vmatpush.msra.mxu0 0.0
    %1065 = vmatpush.msra.mxu0 0.0
    %1066 = vmatpush.msra.mxu0 %v1050
    %1067 = vmatpush.msra.mxu0 %v1043
    %1068 = vmatmul.f32.gmra.mxu0 %v1048
    %v1069 = vpop.f32.mrf.mxu0
    %v1070 = vadd.f32 0.0, %v1069
    %1071 = vdwg.mxu0
    %v1072 = vadd.f32 %v992, %v1070
    %1073 = vrot.lane.b32.xlu0 %v796, 32
    %v1074 = vpop.permute.xlu0 %1073
    %v1075 = vsel %vm55, %v1074, 0
    %1077 = vmatpush.xpose.msra.mxu0 0.0
    %1078 = vmatpush.xpose.msra.mxu0 0.0
    %1079 = vmatpush.xpose.msra.mxu0 0.0
    %1080 = vmatpush.xpose.msra.mxu0 0.0
    %1081 = vmatpush.xpose.msra.mxu0 0.0
    %1082 = vmatpush.xpose.msra.mxu0 0.0
    %1083 = vmatpush.xpose.msra.mxu0 0.0
    %1084 = vmatpush.xpose.msra.mxu0 0.0
    %1085 = vmatpush.xpose.msra.mxu0 0.0
    %1086 = vmatpush.xpose.msra.mxu0 0.0
    %1087 = vmatpush.xpose.msra.mxu0 0.0
    %1088 = vmatpush.xpose.msra.mxu0 0.0
    %1089 = vmatpush.xpose.msra.mxu0 0.0
    %1090 = vmatpush.xpose.msra.mxu0 0.0
    %1091 = vmatpush.xpose.msra.mxu0 %v809
    %1092 = vmatpush.xpose.msra.mxu0 %v806
    %1093 = vmatmul.f32.gmra.mxu0 %v1075
    %v1094 = vpop.f32.mrf.mxu0
    %v1095 = vadd.f32 0.0, %v1094
    %1096 = vdwg.mxu0
    %v1097 = vsel %vm863, %v1095, -inf
    %1098 = vmax.xlane.f32.xlu0 %v1097
    %v1099 = vpop.xlane.xlu0 %1098
    %v1100 = vsub.f32 %v1095, %v1099
    %v1101 = vmul.f32 %v1100, 1.442695
    %v1102 = vpow.pop %v1101
    %v1103 = vsel %vm863, %v1102, 0.0
    %1104 = vadd.xlane.f32.xlu0 %v1103
    %v1105 = vpop.xlane.xlu0 %1104
    %v1106 = vrcp.pop %v1105
    %v1107 = vmul.f32 %v1105, %v1106
    %v1108 = vsub.f32 1.0, %v1107
    %v1109 = vmul.f32 %v1106, %v1108
    %v1110 = vadd.f32 %v1106, %v1109
    %vm1111 = vweird.f32 %v1105
    %vm1112 = vweird.f32 %v1106
    %vm1113 = vmor %vm1111, %vm1112
    %v1114 = vsel %vm1113, %v1106, %v1110
    %v1115 = vand.u32 2147483647, %v1105
    %vm1116 = vcmp.eq.f32.partialorder %v1115, 8.507059e+37
    %v1117 = vand.u32 %v1105, 2147483648
    %v1118 = vor.u32 1.1754944e-38, %v1117
    %v1119 = vsel %vm1116, %v1118, %v1114
    %v1120 = vmul.f32 %v1102, %v1119
    %1121 = vrot.lane.b32.xlu0 %v832, 32
    %v1122 = vpop.permute.xlu0 %1121
    %1123 = vrot.lane.b32.xlu0 %v835, 32
    %v1124 = vpop.permute.xlu0 %1123
    %v1127 = vsel %vm863, %v1120, 0
    %v1129 = vsel %vm946, %v1124, 0
    %1131 = vmatpush.msra.mxu0 0.0
    %1132 = vmatpush.msra.mxu0 0.0
    %1133 = vmatpush.msra.mxu0 0.0
    %1134 = vmatpush.msra.mxu0 0.0
    %1135 = vmatpush.msra.mxu0 0.0
    %1136 = vmatpush.msra.mxu0 0.0
    %1137 = vmatpush.msra.mxu0 0.0
    %1138 = vmatpush.msra.mxu0 0.0
    %1139 = vmatpush.msra.mxu0 0.0
    %1140 = vmatpush.msra.mxu0 0.0
    %1141 = vmatpush.msra.mxu0 0.0
    %1142 = vmatpush.msra.mxu0 0.0
    %1143 = vmatpush.msra.mxu0 0.0
    %1144 = vmatpush.msra.mxu0 0.0
    %1145 = vmatpush.msra.mxu0 %v1129
    %1146 = vmatpush.msra.mxu0 %v1122
    %1147 = vmatmul.f32.gmra.mxu0 %v1127
    %v1148 = vpop.f32.mrf.mxu0
    %v1149 = vadd.f32 0.0, %v1148
    %1150 = vdwg.mxu0
    %v1151 = vadd.f32 %v1072, %v1149
    %v1152 = vrot.slane %v766, 4
    %v1153 = vrot.slane %v767, 4
    %v1154 = vsel %vm946, %v1152, %v1153
    %v1156 = vsel %vm55, %v799, 0
    %v1158 = vsel %vm55, %v1154, 0
    %v1160 = vsel %vm55, %v1153, 0
    %1162 = vmatpush.xpose.msra.mxu0 0.0
    %1163 = vmatpush.xpose.msra.mxu0 0.0
    %1164 = vmatpush.xpose.msra.mxu0 0.0
    %1165 = vmatpush.xpose.msra.mxu0 0.0
    %1166 = vmatpush.xpose.msra.mxu0 0.0
    %1167 = vmatpush.xpose.msra.mxu0 0.0
    %1168 = vmatpush.xpose.msra.mxu0 0.0
    %1169 = vmatpush.xpose.msra.mxu0 0.0
    %1170 = vmatpush.xpose.msra.mxu0 0.0
    %1171 = vmatpush.xpose.msra.mxu0 0.0
    %1172 = vmatpush.xpose.msra.mxu0 0.0
    %1173 = vmatpush.xpose.msra.mxu0 0.0
    %1174 = vmatpush.xpose.msra.mxu0 0.0
    %1175 = vmatpush.xpose.msra.mxu0 0.0
    %1176 = vmatpush.xpose.msra.mxu0 %v1160
    %1177 = vmatpush.xpose.msra.mxu0 %v1158
    %1178 = vmatmul.f32.gmra.mxu0 %v1156
    %v1179 = vpop.f32.mrf.mxu0
    %v1180 = vadd.f32 0.0, %v1179
    %1181 = vdwg.mxu0
    %v1182 = vsel %vm863, %v1180, -inf
    %1183 = vmax.xlane.f32.xlu0 %v1182
    %v1184 = vpop.xlane.xlu0 %1183
    %v1185 = vsub.f32 %v1180, %v1184
    %v1186 = vmul.f32 %v1185, 1.442695
    %v1187 = vpow.pop %v1186
    %v1188 = vsel %vm863, %v1187, 0.0
    %1189 = vadd.xlane.f32.xlu0 %v1188
    %v1190 = vpop.xlane.xlu0 %1189
    %v1191 = vrcp.pop %v1190
    %v1192 = vmul.f32 %v1190, %v1191
    %v1193 = vsub.f32 1.0, %v1192
    %v1194 = vmul.f32 %v1191, %v1193
    %v1195 = vadd.f32 %v1191, %v1194
    %vm1196 = vweird.f32 %v1190
    %vm1197 = vweird.f32 %v1191
    %vm1198 = vmor %vm1196, %vm1197
    %v1199 = vsel %vm1198, %v1191, %v1195
    %v1200 = vand.u32 2147483647, %v1190
    %vm1201 = vcmp.eq.f32.partialorder %v1200, 8.507059e+37
    %v1202 = vand.u32 %v1190, 2147483648
    %v1203 = vor.u32 1.1754944e-38, %v1202
    %v1204 = vsel %vm1201, %v1203, %v1199
    %v1205 = vmul.f32 %v1187, %v1204
    %1206 = vrot.lane.b32.xlu0 %v799, 96
    %v1207 = vpop.permute.xlu0 %1206
    %v1208 = vsel %vm55, %v1207, 0
    %1210 = vmatpush.xpose.msra.mxu0 0.0
    %1211 = vmatpush.xpose.msra.mxu0 0.0
    %1212 = vmatpush.xpose.msra.mxu0 0.0
    %1213 = vmatpush.xpose.msra.mxu0 0.0
    %1214 = vmatpush.xpose.msra.mxu0 0.0
    %1215 = vmatpush.xpose.msra.mxu0 0.0
    %1216 = vmatpush.xpose.msra.mxu0 0.0
    %1217 = vmatpush.xpose.msra.mxu0 0.0
    %1218 = vmatpush.xpose.msra.mxu0 0.0
    %1219 = vmatpush.xpose.msra.mxu0 0.0
    %1220 = vmatpush.xpose.msra.mxu0 0.0
    %1221 = vmatpush.xpose.msra.mxu0 0.0
    %1222 = vmatpush.xpose.msra.mxu0 0.0
    %1223 = vmatpush.xpose.msra.mxu0 0.0
    %1224 = vmatpush.xpose.msra.mxu0 %v1160
    %1225 = vmatpush.xpose.msra.mxu0 %v1158
    %1226 = vmatmul.f32.gmra.mxu0 %v1208
    %v1227 = vpop.f32.mrf.mxu0
    %v1228 = vadd.f32 0.0, %v1227
    %1229 = vdwg.mxu0
    %v1230 = vsel %vm863, %v1228, -inf
    %1231 = vmax.xlane.f32.xlu0 %v1230
    %v1232 = vpop.xlane.xlu0 %1231
    %v1233 = vsub.f32 %v1228, %v1232
    %v1234 = vmul.f32 %v1233, 1.442695
    %v1235 = vpow.pop %v1234
    %v1236 = vsel %vm863, %v1235, 0.0
    %1237 = vadd.xlane.f32.xlu0 %v1236
    %v1238 = vpop.xlane.xlu0 %1237
    %v1239 = vrcp.pop %v1238
    %v1240 = vmul.f32 %v1238, %v1239
    %v1241 = vsub.f32 1.0, %v1240
    %v1242 = vmul.f32 %v1239, %v1241
    %v1243 = vadd.f32 %v1239, %v1242
    %vm1244 = vweird.f32 %v1238
    %vm1245 = vweird.f32 %v1239
    %vm1246 = vmor %vm1244, %vm1245
    %v1247 = vsel %vm1246, %v1239, %v1243
    %v1248 = vand.u32 2147483647, %v1238
    %vm1249 = vcmp.eq.f32.partialorder %v1248, 8.507059e+37
    %v1250 = vand.u32 %v1238, 2147483648
    %v1251 = vor.u32 1.1754944e-38, %v1250
    %v1252 = vsel %vm1249, %v1251, %v1247
    %v1253 = vmul.f32 %v1235, %v1252
    %v1255 = vrot.slane %v835, 4
    %v1256 = vrot.slane %v838, 4
    %v1257 = vsel %vm946, %v1255, %v1256
    %1258 = vrot.lane.b32.xlu0 %v1257, 96
    %v1259 = vpop.permute.xlu0 %1258
    %1260 = vrot.lane.b32.xlu0 %v1256, 96
    %v1261 = vpop.permute.xlu0 %1260
    %v1264 = vsel %vm863, %v1253, 0
    %v1266 = vsel %vm946, %v1261, 0
    %1268 = vmatpush.msra.mxu0 0.0
    %1269 = vmatpush.msra.mxu0 0.0
    %1270 = vmatpush.msra.mxu0 0.0
    %1271 = vmatpush.msra.mxu0 0.0
    %1272 = vmatpush.msra.mxu0 0.0
    %1273 = vmatpush.msra.mxu0 0.0
    %1274 = vmatpush.msra.mxu0 0.0
    %1275 = vmatpush.msra.mxu0 0.0
    %1276 = vmatpush.msra.mxu0 0.0
    %1277 = vmatpush.msra.mxu0 0.0
    %1278 = vmatpush.msra.mxu0 0.0
    %1279 = vmatpush.msra.mxu0 0.0
    %1280 = vmatpush.msra.mxu0 0.0
    %1281 = vmatpush.msra.mxu0 0.0
    %1282 = vmatpush.msra.mxu0 %v1266
    %1283 = vmatpush.msra.mxu0 %v1259
    %1284 = vmatmul.f32.gmra.mxu0 %v1264
    %v1285 = vpop.f32.mrf.mxu0
    %v1286 = vadd.f32 0.0, %v1285
    %1287 = vdwg.mxu0
    %v1290 = vsel %vm863, %v1205, 0
    %v1292 = vsel %vm946, %v1256, 0
    %1294 = vmatpush.msra.mxu0 0.0
    %1295 = vmatpush.msra.mxu0 0.0
    %1296 = vmatpush.msra.mxu0 0.0
    %1297 = vmatpush.msra.mxu0 0.0
    %1298 = vmatpush.msra.mxu0 0.0
    %1299 = vmatpush.msra.mxu0 0.0
    %1300 = vmatpush.msra.mxu0 0.0
    %1301 = vmatpush.msra.mxu0 0.0
    %1302 = vmatpush.msra.mxu0 0.0
    %1303 = vmatpush.msra.mxu0 0.0
    %1304 = vmatpush.msra.mxu0 0.0
    %1305 = vmatpush.msra.mxu0 0.0
    %1306 = vmatpush.msra.mxu0 0.0
    %1307 = vmatpush.msra.mxu0 0.0
    %1308 = vmatpush.msra.mxu0 %v1292
    %1309 = vmatpush.msra.mxu0 %v1257
    %1310 = vmatmul.f32.gmra.mxu0 %v1290
    %v1311 = vpop.f32.mrf.mxu0
    %v1312 = vadd.f32 %v1286, %v1311
    %1313 = vdwg.mxu0
    %1314 = vrot.lane.b32.xlu0 %v799, 64
    %v1315 = vpop.permute.xlu0 %1314
    %v1316 = vsel %vm55, %v1315, 0
    %1318 = vmatpush.xpose.msra.mxu0 0.0
    %1319 = vmatpush.xpose.msra.mxu0 0.0
    %1320 = vmatpush.xpose.msra.mxu0 0.0
    %1321 = vmatpush.xpose.msra.mxu0 0.0
    %1322 = vmatpush.xpose.msra.mxu0 0.0
    %1323 = vmatpush.xpose.msra.mxu0 0.0
    %1324 = vmatpush.xpose.msra.mxu0 0.0
    %1325 = vmatpush.xpose.msra.mxu0 0.0
    %1326 = vmatpush.xpose.msra.mxu0 0.0
    %1327 = vmatpush.xpose.msra.mxu0 0.0
    %1328 = vmatpush.xpose.msra.mxu0 0.0
    %1329 = vmatpush.xpose.msra.mxu0 0.0
    %1330 = vmatpush.xpose.msra.mxu0 0.0
    %1331 = vmatpush.xpose.msra.mxu0 0.0
    %1332 = vmatpush.xpose.msra.mxu0 %v1160
    %1333 = vmatpush.xpose.msra.mxu0 %v1158
    %1334 = vmatmul.f32.gmra.mxu0 %v1316
    %v1335 = vpop.f32.mrf.mxu0
    %v1336 = vadd.f32 0.0, %v1335
    %1337 = vdwg.mxu0
    %v1338 = vsel %vm863, %v1336, -inf
    %1339 = vmax.xlane.f32.xlu0 %v1338
    %v1340 = vpop.xlane.xlu0 %1339
    %v1341 = vsub.f32 %v1336, %v1340
    %v1342 = vmul.f32 %v1341, 1.442695
    %v1343 = vpow.pop %v1342
    %v1344 = vsel %vm863, %v1343, 0.0
    %1345 = vadd.xlane.f32.xlu0 %v1344
    %v1346 = vpop.xlane.xlu0 %1345
    %v1347 = vrcp.pop %v1346
    %v1348 = vmul.f32 %v1346, %v1347
    %v1349 = vsub.f32 1.0, %v1348
    %v1350 = vmul.f32 %v1347, %v1349
    %v1351 = vadd.f32 %v1347, %v1350
    %vm1352 = vweird.f32 %v1346
    %vm1353 = vweird.f32 %v1347
    %vm1354 = vmor %vm1352, %vm1353
    %v1355 = vsel %vm1354, %v1347, %v1351
    %v1356 = vand.u32 2147483647, %v1346
    %vm1357 = vcmp.eq.f32.partialorder %v1356, 8.507059e+37
    %v1358 = vand.u32 %v1346, 2147483648
    %v1359 = vor.u32 1.1754944e-38, %v1358
    %v1360 = vsel %vm1357, %v1359, %v1355
    %v1361 = vmul.f32 %v1343, %v1360
    %1362 = vrot.lane.b32.xlu0 %v1257, 64
    %v1363 = vpop.permute.xlu0 %1362
    %1364 = vrot.lane.b32.xlu0 %v1256, 64
    %v1365 = vpop.permute.xlu0 %1364
    %v1368 = vsel %vm863, %v1361, 0
    %v1370 = vsel %vm946, %v1365, 0
    %1372 = vmatpush.msra.mxu0 0.0
    %1373 = vmatpush.msra.mxu0 0.0
    %1374 = vmatpush.msra.mxu0 0.0
    %1375 = vmatpush.msra.mxu0 0.0
    %1376 = vmatpush.msra.mxu0 0.0
    %1377 = vmatpush.msra.mxu0 0.0
    %1378 = vmatpush.msra.mxu0 0.0
    %1379 = vmatpush.msra.mxu0 0.0
    %1380 = vmatpush.msra.mxu0 0.0
    %1381 = vmatpush.msra.mxu0 0.0
    %1382 = vmatpush.msra.mxu0 0.0
    %1383 = vmatpush.msra.mxu0 0.0
    %1384 = vmatpush.msra.mxu0 0.0
    %1385 = vmatpush.msra.mxu0 0.0
    %1386 = vmatpush.msra.mxu0 %v1370
    %1387 = vmatpush.msra.mxu0 %v1363
    %1388 = vmatmul.f32.gmra.mxu0 %v1368
    %v1389 = vpop.f32.mrf.mxu0
    %v1390 = vadd.f32 0.0, %v1389
    %1391 = vdwg.mxu0
    %v1392 = vadd.f32 %v1312, %v1390
    %1393 = vrot.lane.b32.xlu0 %v799, 32
    %v1394 = vpop.permute.xlu0 %1393
    %v1395 = vsel %vm55, %v1394, 0
    %1397 = vmatpush.xpose.msra.mxu0 0.0
    %1398 = vmatpush.xpose.msra.mxu0 0.0
    %1399 = vmatpush.xpose.msra.mxu0 0.0
    %1400 = vmatpush.xpose.msra.mxu0 0.0
    %1401 = vmatpush.xpose.msra.mxu0 0.0
    %1402 = vmatpush.xpose.msra.mxu0 0.0
    %1403 = vmatpush.xpose.msra.mxu0 0.0
    %1404 = vmatpush.xpose.msra.mxu0 0.0
    %1405 = vmatpush.xpose.msra.mxu0 0.0
    %1406 = vmatpush.xpose.msra.mxu0 0.0
    %1407 = vmatpush.xpose.msra.mxu0 0.0
    %1408 = vmatpush.xpose.msra.mxu0 0.0
    %1409 = vmatpush.xpose.msra.mxu0 0.0
    %1410 = vmatpush.xpose.msra.mxu0 0.0
    %1411 = vmatpush.xpose.msra.mxu0 %v1160
    %1412 = vmatpush.xpose.msra.mxu0 %v1158
    %1413 = vmatmul.f32.gmra.mxu0 %v1395
    %v1414 = vpop.f32.mrf.mxu0
    %v1415 = vadd.f32 0.0, %v1414
    %1416 = vdwg.mxu0
    %v1417 = vsel %vm863, %v1415, -inf
    %1418 = vmax.xlane.f32.xlu0 %v1417
    %v1419 = vpop.xlane.xlu0 %1418
    %v1420 = vsub.f32 %v1415, %v1419
    %v1421 = vmul.f32 %v1420, 1.442695
    %v1422 = vpow.pop %v1421
    %v1423 = vsel %vm863, %v1422, 0.0
    %1424 = vadd.xlane.f32.xlu0 %v1423
    %v1425 = vpop.xlane.xlu0 %1424
    %v1426 = vrcp.pop %v1425
    %v1427 = vmul.f32 %v1425, %v1426
    %v1428 = vsub.f32 1.0, %v1427
    %v1429 = vmul.f32 %v1426, %v1428
    %v1430 = vadd.f32 %v1426, %v1429
    %vm1431 = vweird.f32 %v1425
    %vm1432 = vweird.f32 %v1426
    %vm1433 = vmor %vm1431, %vm1432
    %v1434 = vsel %vm1433, %v1426, %v1430
    %v1435 = vand.u32 2147483647, %v1425
    %vm1436 = vcmp.eq.f32.partialorder %v1435, 8.507059e+37
    %v1437 = vand.u32 %v1425, 2147483648
    %v1438 = vor.u32 1.1754944e-38, %v1437
    %v1439 = vsel %vm1436, %v1438, %v1434
    %v1440 = vmul.f32 %v1422, %v1439
    %1441 = vrot.lane.b32.xlu0 %v1257, 32
    %v1442 = vpop.permute.xlu0 %1441
    %1443 = vrot.lane.b32.xlu0 %v1256, 32
    %v1444 = vpop.permute.xlu0 %1443
    %v1447 = vsel %vm863, %v1440, 0
    %v1449 = vsel %vm946, %v1444, 0
    %1451 = vmatpush.msra.mxu0 0.0
    %1452 = vmatpush.msra.mxu0 0.0
    %1453 = vmatpush.msra.mxu0 0.0
    %1454 = vmatpush.msra.mxu0 0.0
    %1455 = vmatpush.msra.mxu0 0.0
    %1456 = vmatpush.msra.mxu0 0.0
    %1457 = vmatpush.msra.mxu0 0.0
    %1458 = vmatpush.msra.mxu0 0.0
    %1459 = vmatpush.msra.mxu0 0.0
    %1460 = vmatpush.msra.mxu0 0.0
    %1461 = vmatpush.msra.mxu0 0.0
    %1462 = vmatpush.msra.mxu0 0.0
    %1463 = vmatpush.msra.mxu0 0.0
    %1464 = vmatpush.msra.mxu0 0.0
    %1465 = vmatpush.msra.mxu0 %v1449
    %1466 = vmatpush.msra.mxu0 %v1442
    %1467 = vmatmul.f32.gmra.mxu0 %v1447
    %v1468 = vpop.f32.mrf.mxu0
    %v1469 = vadd.f32 0.0, %v1468
    %1470 = vdwg.mxu0
    %v1471 = vadd.f32 %v1392, %v1469
    %v1472 = vadd.f32 %v1151, %v760
    %v1473 = vadd.f32 %v1471, %v761
    %v1474 = vadd.f32 %v760, %v1472
    %v1475 = vadd.f32 %v761, %v1473
    %v1476 = vsel %vm55, %v1474, 0.0
    %1477 = vadd.xlane.f32.xlu0 %v1476
    %v1478 = vpop.xlane.xlu0 %1477
    %v1479 = vsel %vm55, %v1475, 0.0
    %1480 = vadd.xlane.f32.xlu0 %v1479
    %v1481 = vpop.xlane.xlu0 %1480
    %v1482 = vmul.f32 %v1478, %v715
    %v1483 = vmul.f32 %v1481, %v715
    %v1484 = vsub.f32 %v1474, %v1482
    %v1485 = vsub.f32 %v1475, %v1483
    %v1486 = vmul.f32 %v1484, %v1484
    %v1487 = vmul.f32 %v1485, %v1485
    %v1488 = vsel %vm55, %v1486, 0.0
    %1489 = vadd.xlane.f32.xlu0 %v1488
    %v1490 = vpop.xlane.xlu0 %1489
    %v1491 = vsel %vm55, %v1487, 0.0
    %1492 = vadd.xlane.f32.xlu0 %v1491
    %v1493 = vpop.xlane.xlu0 %1492
    %v1494 = vmul.f32 %v1490, %v715
    %v1495 = vmul.f32 %v1493, %v715
    %v1496 = vadd.f32 %v1494, 1e-05
    %v1497 = vadd.f32 %v1495, 1e-05
    %v1498 = vrsqrt.pop %v1496
    %v1499 = vmul.f32 %v1498, %v1496
    %v1500 = vmul.f32 %v1499, %v1498
    %v1501 = vmul.f32 0.5, %v1500
    %v1502 = vsub.f32 1.5, %v1501
    %v1503 = vmul.f32 %v1498, %v1502
    %vm1504 = vweird.f32 %v1496
    %vm1505 = vweird.f32 %v1498
    %vm1506 = vmor %vm1504, %vm1505
    %v1507 = vsel %vm1506, %v1498, %v1503
    %v1508 = vrsqrt.pop %v1497
    %v1509 = vmul.f32 %v1508, %v1497
    %v1510 = vmul.f32 %v1509, %v1508
    %v1511 = vmul.f32 0.5, %v1510
    %v1512 = vsub.f32 1.5, %v1511
    %v1513 = vmul.f32 %v1508, %v1512
    %vm1514 = vweird.f32 %v1497
    %vm1515 = vweird.f32 %v1508
    %vm1516 = vmor %vm1514, %vm1515
    %v1517 = vsel %vm1516, %v1508, %v1513
    %v1518 = vmul.f32 %v1484, %v1507
    %v1519 = vmul.f32 %v1485, %v1517
    %v1520 = vperm.slane %v37, 4
    %v1521 = vmul.f32 %v1518, %v1520
    %v1522 = vmul.f32 %v1519, %v1520
    %v1523 = vperm.slane %v37, 5
    %v1524 = vadd.f32 %v1521, %v1523
    %v1525 = vadd.f32 %v1522, %v1523
    %v1526 = vld [vmem:[#allocation2 + $0x20] sm:$0xff]
    %v1527 = vld [vmem:[#allocation2 + $0x50] sm:$0xff]
    %v1528 = vld [vmem:[#allocation2 + $0x80] sm:$0xff]
    %v1529 = vld [vmem:[#allocation2 + $0xb0] sm:$0xff]
    %v1530 = vperm.slane %v37, 0
    %v1532 = vsel %vm55, %v1524, 0
    %v1535 = vsel %vm55, %v1525, 0
    %1537 = vmatpush.msra.mxu0 0.0
    %1538 = vmatpush.msra.mxu0 0.0
    %1539 = vmatpush.msra.mxu0 0.0
    %1540 = vmatpush.msra.mxu0 0.0
    %1541 = vmatpush.msra.mxu0 0.0
    %1542 = vmatpush.msra.mxu0 0.0
    %1543 = vmatpush.msra.mxu0 0.0
    %1544 = vmatpush.msra.mxu0 0.0
    %1545 = vmatpush.msra.mxu0 0.0
    %1546 = vmatpush.msra.mxu0 0.0
    %1547 = vmatpush.msra.mxu0 0.0
    %1548 = vmatpush.msra.mxu0 0.0
    %1549 = vmatpush.msra.mxu0 %v1529
    %1550 = vmatpush.msra.mxu0 %v1528
    %1551 = vmatpush.msra.mxu0 %v1527
    %1552 = vmatpush.msra.mxu0 %v1526
    %1553 = vmatmul.f32.gmra.mxu0 %v1532
    %v1554 = vpop.f32.mrf.mxu0
    %v1555 = vadd.f32 %v1530, %v1554
    %1556 = vmatmul.f32.gmra.mxu0 %v1535
    %v1557 = vpop.f32.mrf.mxu0
    %v1558 = vadd.f32 %v1530, %v1557
    %1559 = vdwg.mxu0
    %v1560 = vmax.f32 %v1555, 0.0
    %v1561 = vmax.f32 %v1558, 0.0
    %v1562 = vld [vmem:[#allocation2 + $0x28] sm:$0xff]
    %v1563 = vld [vmem:[#allocation2 + $0x58] sm:$0xff]
    %v1564 = vld [vmem:[#allocation2 + $0x88] sm:$0xff]
    %v1565 = vld [vmem:[#allocation2 + $0xb8] sm:$0xff]
    %v1566 = vperm.slane %v37, 1
    %1567 = vmatpush.xpose.msra.mxu0 0.0
    %1568 = vmatpush.xpose.msra.mxu0 0.0
    %1569 = vmatpush.xpose.msra.mxu0 0.0
    %1570 = vmatpush.xpose.msra.mxu0 0.0
    %1571 = vmatpush.xpose.msra.mxu0 0.0
    %1572 = vmatpush.xpose.msra.mxu0 0.0
    %1573 = vmatpush.xpose.msra.mxu0 0.0
    %1574 = vmatpush.xpose.msra.mxu0 0.0
    %1575 = vmatpush.xpose.msra.mxu0 0.0
    %1576 = vmatpush.xpose.msra.mxu0 0.0
    %1577 = vmatpush.xpose.msra.mxu0 0.0
    %1578 = vmatpush.xpose.msra.mxu0 0.0
    %1579 = vmatpush.xpose.msra.mxu0 %v1565
    %1580 = vmatpush.xpose.msra.mxu0 %v1564
    %1581 = vmatpush.xpose.msra.mxu0 %v1563
    %1582 = vmatpush.xpose.msra.mxu0 %v1562
    %1583 = vmatmul.f32.gmra.mxu0 %v1560
    %v1584 = vpop.f32.mrf.mxu0
    %v1585 = vadd.f32 %v1566, %v1584
    %1586 = vmatmul.f32.gmra.mxu0 %v1561
    %v1587 = vpop.f32.mrf.mxu0
    %v1588 = vadd.f32 %v1566, %v1587
    %1589 = vdwg.mxu0
    %v1590 = vadd.f32 %v1524, %v1585
    %v1591 = vadd.f32 %v1525, %v1588
    %v1592 = vsel %vm55, %v1590, 0.0
    %1593 = vadd.xlane.f32.xlu0 %v1592
    %v1594 = vpop.xlane.xlu0 %1593
    %v1595 = vsel %vm55, %v1591, 0.0
    %1596 = vadd.xlane.f32.xlu0 %v1595
    %v1597 = vpop.xlane.xlu0 %1596
    %v1598 = vmul.f32 %v1594, %v715
    %v1599 = vmul.f32 %v1597, %v715
    %v1600 = vsub.f32 %v1590, %v1598
    %v1601 = vsub.f32 %v1591, %v1599
    %v1602 = vmul.f32 %v1600, %v1600
    %v1603 = vmul.f32 %v1601, %v1601
    %v1604 = vsel %vm55, %v1602, 0.0
    %1605 = vadd.xlane.f32.xlu0 %v1604
    %v1606 = vpop.xlane.xlu0 %1605
    %v1607 = vsel %vm55, %v1603, 0.0
    %1608 = vadd.xlane.f32.xlu0 %v1607
    %v1609 = vpop.xlane.xlu0 %1608
    %v1610 = vmul.f32 %v1606, %v715
    %v1611 = vmul.f32 %v1609, %v715
    %v1612 = vadd.f32 %v1610, 1e-05
    %v1613 = vadd.f32 %v1611, 1e-05
    %v1614 = vrsqrt.pop %v1612
    %v1615 = vmul.f32 %v1614, %v1612
    %v1616 = vmul.f32 %v1615, %v1614
    %v1617 = vmul.f32 0.5, %v1616
    %v1618 = vsub.f32 1.5, %v1617
    %v1619 = vmul.f32 %v1614, %v1618
    %vm1620 = vweird.f32 %v1612
    %vm1621 = vweird.f32 %v1614
    %vm1622 = vmor %vm1620, %vm1621
    %v1623 = vsel %vm1622, %v1614, %v1619
    %v1624 = vrsqrt.pop %v1613
    %v1625 = vmul.f32 %v1624, %v1613
    %v1626 = vmul.f32 %v1625, %v1624
    %v1627 = vmul.f32 0.5, %v1626
    %v1628 = vsub.f32 1.5, %v1627
    %v1629 = vmul.f32 %v1624, %v1628
    %vm1630 = vweird.f32 %v1613
    %vm1631 = vweird.f32 %v1624
    %vm1632 = vmor %vm1630, %vm1631
    %v1633 = vsel %vm1632, %v1624, %v1629
    %v1634 = vmul.f32 %v1600, %v1623
    %v1635 = vmul.f32 %v1601, %v1633
    %v1636 = vperm.slane %v37, 6
    %v1637 = vmul.f32 %v1634, %v1636
    %v1638 = vmul.f32 %v1635, %v1636
    %v1639 = vperm.slane %v37, 7
    %v1640 = vadd.f32 %v1637, %v1639
    %v1641 = vadd.f32 %v1638, %v1639
    %1642 = vst.msk [vmem:[#allocation5] sm:$0xff] %vm55, %v1640
    %1643 = vst.msk [vmem:[#allocation5 + $0x8] sm:$0xff] %vm55, %v1641
    // Predicated region
    $region26: #{tpu_custom_call.1} parent=1 // pred_check
      _
    $region27: #{tpu_custom_call.1} parent=1 // pred_check_branch
      %1645 = sbr.rel (0) target = $region29
    $region28: #{tpu_custom_call.1} parent=1 // pred_region
      %1647 = vsyncadd [#allocation4], 0
      %s1648 = sshll.u32 [#allocation5], 4
      %s1649 = int_to_ptr.vmem [resolvable:$true] %s1648
      %s1650 = sshll.u32 %s5, 4
      %s1651 = int_to_ptr.hbm [resolvable:$true] %s1650
      %1656 = dma.vmem_to_hbm [thread:$0]  %s1649, 256, %s1651, [#allocation4], 128, 128, 8
    $region29: #{tpu_custom_call.1} parent=1 // pred_fallthru
      _
    // Predicated region
    $region30: #{tpu_custom_call.1} parent=1 // pred_check
      _
    $region31: #{tpu_custom_call.1} parent=1 // pred_check_branch
      %1658 = sbr.rel (0) target = $region33
    $region32: #{tpu_custom_call.1} parent=1 // pred_region
      %1660 = dma.done [#allocation4], 256
    $region33: #{tpu_custom_call.1} parent=1 // pred_fallthru
      _
    %1661 = vsyncpa [#allocation3], 1
    %1662 = vsyncpa [#allocation4], 1

</llo_original>
